<compile_context>
chip_gen: v7x
topology: tpu7x:2x2x1
jax: 0.10.0
libtpu: 0.0.40
codegen_flags: <defaults>
</compile_context>

<pallas_src>
import math

import jax
import jax.numpy as jnp
import numpy as np
from jax.experimental import pallas as pl
from jax.experimental.pallas import tpu as pltpu

REG_MAX = 16
SIDES = 4                 # l, t, r, b


def _make_projection_weight(reg_max, pack):
    """Block-diagonal (pack*4*(reg_max+1), 2*pack*4) projection weight.

    Column  4*b+s            : project (0..reg_max) for box b, side s  -> num
    Column  pack*4 + 4*b+s   : ones                                    -> den
    Values (0..reg_max, 1.0) are exact in bf16.
    """
    k1 = reg_max + 1
    row_w = pack * SIDES * k1
    out_w = pack * SIDES
    w = np.zeros((row_w, 2 * out_w), dtype=np.float32)
    proj = np.arange(k1, dtype=np.float32)
    for b in range(pack):
        for s in range(SIDES):
            r0 = (b * SIDES + s) * k1
            col = b * SIDES + s
            w[r0:r0 + k1, col] = proj
            w[r0:r0 + k1, out_w + col] = 1.0
    return w


def integral_kernel(x_ref, w_ref, o_ref):
    """One block of packed rows.

    x_ref: (bp, pack*4*K1)       lane-dense logits for bp*pack boxes
    w_ref: (pack*4*K1, 2*pack*4) constant block-diagonal projection weight
    o_ref: (bp, pack*4)          packed results (byte-identical to (bp*pack,4))
    """
    out_w = o_ref.shape[-1]
    x = x_ref[...].astype(jnp.float32)

    # One max per packed row (32 boxes): mostly VALU (cross-vreg maxes) plus a
    # single cross-lane reduce per 8 rows.  Subtracting the same constant from
    # every side leaves each side's softmax unchanged.
    # NOTE: if sides within one packed row differed by > ~87 logits the weaker
    # side would underflow (guarded below) -- not reachable for detection heads.
    m = jnp.max(x, axis=-1, keepdims=True)
    e = jnp.exp(x - m)                                   # EUP, f32, in (0, 1]

    # bf16 hi/lo split -> two native bf16 MXU passes with f32 accumulation.
    # Representation error <= ~2^-18 relative, comfortably inside the 1e-4
    # tolerance, independent of backend f32-matmul precision defaults.
    e_hi = e.astype(jnp.bfloat16)
    e_lo = (e - e_hi.astype(jnp.float32)).astype(jnp.bfloat16)
    w = w_ref[...]
    r = jnp.dot(e_hi, w, preferred_element_type=jnp.float32)
    r = r + jnp.dot(e_lo, w, preferred_element_type=jnp.float32)

    num = r[:, :out_w]                                   # lane-aligned slices
    den = jnp.maximum(r[:, out_w:], jnp.float32(1e-30))  # underflow guard
    o_ref[...] = (num * pl.reciprocal(den, approx=False)).astype(o_ref.dtype)


def integral(x, reg_max=REG_MAX, block_boxes=16384):
    """x: (N, 4*(reg_max+1)) -> (N, 4)."""
    n, c = x.shape
    k1 = reg_max + 1
    assert c == SIDES * k1, f"expected last dim {SIDES * k1}, got {c}"

    # Boxes packed per lane-dense row: smallest p with 4*K1*p % 128 == 0.
    pack = 128 // math.gcd(SIDES * k1, 128)          # 32 for reg_max=16
    row_w = pack * SIDES * k1                        # 2176
    out_w = pack * SIDES                             # 128

    # Pad box count only to a multiple of pack*8 (packed rows then sit on an
    # 8-sublane boundary).  No pad at all when already aligned.
    # TODO(synk): for large ragged N, run the tail boxes through a second tiny
    # pallas_call instead of jnp.pad (the pad materializes an extra HBM copy).
    align = pack * 8
    n_pad = pl.cdiv(n, align) * align
    xp = x if n_pad == n else jnp.pad(x, ((0, n_pad - n), (0, 0)))

    p_rows = n_pad // pack
    x_packed = xp.reshape(p_rows, row_w)             # contiguous => free bitcast

    w = jnp.asarray(_make_projection_weight(reg_max, pack), dtype=jnp.bfloat16)

    # Packed rows per grid step (= block_boxes boxes); big blocks amortize the
    # ~0.35us per-step overhead.  Ragged last block handled by Pallas (cdiv).
    bp = max(8, (max(1, block_boxes // pack) // 8) * 8)
    bp = min(bp, p_rows)
    grid = (pl.cdiv(p_rows, bp),)

    cost = pl.CostEstimate(
        flops=4 * p_rows * row_w * (2 * out_w),       # two bf16 MXU passes
        transcendentals=p_rows * row_w,               # exp
        bytes_accessed=(p_rows * row_w * x.dtype.itemsize
                        + w.size * 2
                        + p_rows * out_w * x.dtype.itemsize),
    )

    out_packed = pl.pallas_call(
        integral_kernel,
        out_shape=jax.ShapeDtypeStruct((p_rows, out_w), x.dtype),
        grid_spec=pltpu.PrefetchScalarGridSpec(
            num_scalar_prefetch=0,
            grid=grid,
            in_specs=[
                pl.BlockSpec((bp, row_w), lambda i: (i, 0)),
                # Whole weight, constant index -> DMA'd once, kept resident.
                pl.BlockSpec((row_w, 2 * out_w), lambda i: (0, 0)),
            ],
            out_specs=pl.BlockSpec((bp, out_w), lambda i: (i, 0)),
        ),
        compiler_params=pltpu.CompilerParams(
            dimension_semantics=("parallel",),
            vmem_limit_bytes=48 * 1024 * 1024,
        ),
        cost_estimate=cost,
    )(x_packed, w)

    # (p_rows, pack*4) is byte-identical to row-major (n_pad, 4): free reshape.
    out = out_packed.reshape(n_pad, SIDES)
    return out[:n] if n_pad != n else out


def integral_ref(x, reg_max=REG_MAX):
    """Plain-JAX reference mirroring the PyTorch forward."""
    k1 = reg_max + 1
    project = jnp.linspace(0.0, float(reg_max), k1, dtype=jnp.float32)
    xr = x.astype(jnp.float32).reshape(-1, k1)
    p = jax.nn.softmax(xr, axis=1)
    return (p @ project).reshape(-1, SIDES).astype(x.dtype)


if __name__ == "__main__":
    key = jax.random.PRNGKey(0)
    K1 = REG_MAX + 1
    C = SIDES * K1

    def check(name, x, **kw):
        out = jax.block_until_ready(integral(x, **kw))
        ref = integral_ref(x)
        assert out.shape == (x.shape[0], SIDES), (name, out.shape)
        err = float(jnp.max(jnp.abs(out - ref)))
        assert jnp.allclose(out, ref, atol=1e-4, rtol=1e-4), (name, err)

    key_a, key_b, key_c = jax.random.split(key, 3)

    # Small case (pads 32 -> 256 boxes), single block.
    check("n32", jax.random.normal(key_a, (32, C), dtype=jnp.float32))

    # Unaligned N (pad path), single block.
    check("n300", jax.random.normal(key_b, (300, C), dtype=jnp.float32))

    # Multi-block grid with a ragged last block (p_rows=24, bp=16).
    check("n700", jax.random.normal(key_c, (700, C), dtype=jnp.float32),
          block_boxes=512)

    print("KERNEL_OK")
</pallas_src>

<mosaic_0001>
module attributes {stable_mosaic.version = 11 : i64} {
  func.func @integral_kernel(%arg0: i32, %arg1: memref<8x2176xf32, #tpu.memory_space<vmem>>, %arg2: memref<2176x256xbf16, #tpu.memory_space<vmem>>, %arg3: memref<8x128xf32, #tpu.memory_space<vmem>>) attributes {dimension_semantics = [#tpu.dimension_semantics<parallel>], iteration_bounds = array<i64: 1>, scalar_prefetch = 0 : i64, scratch_operands = 0 : i64, tpu.core_type = #tpu.core_type<tc>, window_params = [{transform_indices = @transform_0, window_bounds = array<i64: 8, 2176>}, {pipeline_mode = #tpu.pipeline_mode<synchronous>, transform_indices = @transform_1, window_bounds = array<i64: 2176, 256>}, {transform_indices = @transform_2, window_bounds = array<i64: 8, 128>}]} {
    %c0 = arith.constant 0 : index
    %c0_0 = arith.constant 0 : index
    %0 = vector.load %arg1[%c0, %c0_0] : memref<8x2176xf32, #tpu.memory_space<vmem>>, vector<8x2176xf32>
    %cst = arith.constant dense<0xFF800000> : vector<8xf32>
    %1 = vector.multi_reduction <maximumf>, %0, %cst [1] : vector<8x2176xf32> to vector<8xf32>
    %2 = vector.shape_cast %1 : vector<8xf32> to vector<8x1xf32>
    %3 = vector.broadcast %2 : vector<8x1xf32> to vector<8x2176xf32>
    %4 = arith.subf %0, %3 : vector<8x2176xf32>
    %5 = math.exp %4 : vector<8x2176xf32>
    %6 = arith.truncf %5 : vector<8x2176xf32> to vector<8x2176xbf16>
    %7 = arith.extf %6 : vector<8x2176xbf16> to vector<8x2176xf32>
    %8 = arith.subf %5, %7 : vector<8x2176xf32>
    %9 = arith.truncf %8 : vector<8x2176xf32> to vector<8x2176xbf16>
    %c0_1 = arith.constant 0 : index
    %c0_2 = arith.constant 0 : index
    %10 = vector.load %arg2[%c0_1, %c0_2] : memref<2176x256xbf16, #tpu.memory_space<vmem>>, vector<2176x256xbf16>
    %cst_3 = arith.constant dense<0.000000e+00> : vector<8x256xf32>
    %11 = tpu.matmul %6, %10, %cst_3 {dimension_numbers = #tpu.dot_dimension_numbers<[1], [0], [0], [1], [0, 0, 1, 1], [], []>} : vector<8x2176xbf16>, vector<2176x256xbf16>, vector<8x256xf32> -> vector<8x256xf32>
    %cst_4 = arith.constant dense<0.000000e+00> : vector<8x256xf32>
    %12 = tpu.matmul %9, %10, %cst_4 {dimension_numbers = #tpu.dot_dimension_numbers<[1], [0], [0], [1], [0, 0, 1, 1], [], []>} : vector<8x2176xbf16>, vector<2176x256xbf16>, vector<8x256xf32> -> vector<8x256xf32>
    %13 = arith.addf %11, %12 : vector<8x256xf32>
    %14 = vector.extract_strided_slice %13 {offsets = [0, 0], sizes = [8, 128], strides = [1, 1]} : vector<8x256xf32> to vector<8x128xf32>
    %15 = vector.extract_strided_slice %13 {offsets = [0, 128], sizes = [8, 128], strides = [1, 1]} : vector<8x256xf32> to vector<8x128xf32>
    %cst_5 = arith.constant 1.000000e-30 : f32
    %16 = vector.broadcast %cst_5 : f32 to vector<8x128xf32>
    %17 = arith.maximumf %15, %16 : vector<8x128xf32>
    %18 = tpu.reciprocal %17 : vector<8x128xf32> -> vector<8x128xf32>
    %19 = arith.mulf %14, %18 : vector<8x128xf32>
    %c0_6 = arith.constant 0 : index
    %c0_7 = arith.constant 0 : index
    %20 = vector.load %arg3[%c0_6, %c0_7] : memref<8x128xf32, #tpu.memory_space<vmem>>, vector<8x128xf32>
    tpu.vector_store %arg3[%c0_6, %c0_7], %19 {strides = array<i32>} : memref<8x128xf32, #tpu.memory_space<vmem>>, vector<8x128xf32>,
    return
  }
  func.func @transform_0(%arg0: i32) -> (i32, i32) {
    %c0_i32 = arith.constant 0 : i32
    %c0_i32_0 = arith.constant 0 : i32
    return %arg0, %c0_i32 : i32, i32
  }
  func.func @transform_1(%arg0: i32) -> (i32, i32) {
    %c0_i32 = arith.constant 0 : i32
    %c0_i32_0 = arith.constant 0 : i32
    %c0_i32_1 = arith.constant 0 : i32
    return %c0_i32, %c0_i32_0 : i32, i32
  }
  func.func @transform_2(%arg0: i32) -> (i32, i32) {
    %c0_i32 = arith.constant 0 : i32
    %c0_i32_0 = arith.constant 0 : i32
    return %arg0, %c0_i32 : i32, i32
  }
}

</mosaic_0001>

<llo_original>
// kernel: tpu_custom_call.1
$region0: #{tpu_custom_call.1}
  #allocation0 [shape = 'u32[]', space=smem, size = 0x4, offset = 0x4, fixed_abs, tag = 'smem constant byte address 0x4 - core index']
  #allocation1 [shape = 'u32[144,128]{1,0:T(1,128)}', space=vmem, size = 0x12000, scoped, tag = 'internal scratch']
  %s0 = inlined_call_operand.hbm [shape: f32[8,2176], index: 0, kind: input, shape index: {}]
  %s1 = inlined_call_operand.hbm [shape: bf16[2176,256], index: 1, kind: input, shape index: {}]
  %s2 = inlined_call_operand.hbm [shape: f32[8,128], index: 2, kind: output, shape index: {}]
  %s3 = sld [smem:[#allocation0]]
  $region26: #{tpu_custom_call.1} parent=0
    _
  %s5 = ssub.s32 1, %s3
  %s6 = scalar_select 0, %s5, %s3
  $region1: #{tpu_custom_call.1} parent=0
    #allocation2 [shape = 'u8[69632]{0}', space=vmem, size = 0x11000, scoped, tag = 'input window, operand 0, single buffered']
    #allocation3 [shape = 's32[1]{0}', space=sflag, size = 0x4, scoped, tag = 'scoped memory for tpu_custom_call.1']
    #allocation4 [shape = 's32[1]{0}', space=sflag, size = 0x4, scoped, tag = 'scoped memory for tpu_custom_call.1']
    #allocation5 [shape = 'u8[1114112]{0}', space=vmem, size = 0x110000, scoped, tag = 'input window, operand 1, single buffered']
    #allocation6 [shape = 's32[1]{0}', space=sflag, size = 0x4, scoped, tag = 'scoped memory for tpu_custom_call.1']
    #allocation7 [shape = 'u8[4096]{0}', space=vmem, size = 0x1000, scoped, tag = 'output window, operand 0, single buffered']
    %7 = vsyncpa [#allocation3], 0
    %8 = vsyncpa [#allocation6], 0
    %9 = vsyncpa [#allocation4], 0
    // Predicated region
    $region2: #{tpu_custom_call.1} parent=1 // pred_check
      _
    $region3: #{tpu_custom_call.1} parent=1 // pred_check_branch
      %11 = sbr.rel (0) target = $region5
    $region4: #{tpu_custom_call.1} parent=1 // pred_region
      %s13 = ssub.s32 2176, 2176
      %14 = vsyncadd [#allocation3], %s13
      %s16 = sshll.u32 [#allocation2], 4
      %s17 = int_to_ptr.vmem [resolvable:$true] %s16
      %19 = dma.hbm_to_vmem [thread:$0]  %s0, 2176, %s17, [#allocation3]
    $region5: #{tpu_custom_call.1} parent=1 // pred_fallthru
      _
    // Predicated region
    $region6: #{tpu_custom_call.1} parent=1 // pred_check
      _
    $region7: #{tpu_custom_call.1} parent=1 // pred_check_branch
      %21 = sbr.rel (0) target = $region9
    $region8: #{tpu_custom_call.1} parent=1 // pred_region
      %s23 = ssub.s32 34816, 34816
      %24 = vsyncadd [#allocation6], %s23
      %s25 = sshll.u32 [#allocation5], 4
      %s26 = int_to_ptr.vmem [resolvable:$true] %s25
      %31 = dma.hbm_to_vmem [thread:$0]  %s1, 34816, %s26, [#allocation6], 128, 128, 8
    $region9: #{tpu_custom_call.1} parent=1 // pred_fallthru
      _
    // Predicated region
    $region10: #{tpu_custom_call.1} parent=1 // pred_check
      _
    $region11: #{tpu_custom_call.1} parent=1 // pred_check_branch
      %33 = sbr.rel (0) target = $region13
    $region12: #{tpu_custom_call.1} parent=1 // pred_region
      %34 = dma.done [#allocation3], 2176
    $region13: #{tpu_custom_call.1} parent=1 // pred_fallthru
      _
    // Predicated region
    $region14: #{tpu_custom_call.1} parent=1 // pred_check
      _
    $region15: #{tpu_custom_call.1} parent=1 // pred_check_branch
      %36 = sbr.rel (0) target = $region17
    $region16: #{tpu_custom_call.1} parent=1 // pred_region
      %37 = dma.done [#allocation6], 34816
    $region17: #{tpu_custom_call.1} parent=1 // pred_fallthru
      _
    %v39 = vld [vmem:[#allocation2] sm:$0xff]
    %v40 = vld [vmem:[#allocation2 + $0x8] sm:$0xff]
    %v41 = vld [vmem:[#allocation2 + $0x10] sm:$0xff]
    %v42 = vld [vmem:[#allocation2 + $0x18] sm:$0xff]
    %v43 = vld [vmem:[#allocation2 + $0x20] sm:$0xff]
    %v44 = vld [vmem:[#allocation2 + $0x28] sm:$0xff]
    %v45 = vld [vmem:[#allocation2 + $0x30] sm:$0xff]
    %v46 = vld [vmem:[#allocation2 + $0x38] sm:$0xff]
    %v47 = vld [vmem:[#allocation2 + $0x40] sm:$0xff]
    %v48 = vld [vmem:[#allocation2 + $0x48] sm:$0xff]
    %v49 = vld [vmem:[#allocation2 + $0x50] sm:$0xff]
    %v50 = vld [vmem:[#allocation2 + $0x58] sm:$0xff]
    %v51 = vld [vmem:[#allocation2 + $0x60] sm:$0xff]
    %v52 = vld [vmem:[#allocation2 + $0x68] sm:$0xff]
    %v53 = vld [vmem:[#allocation2 + $0x70] sm:$0xff]
    %v54 = vld [vmem:[#allocation2 + $0x78] sm:$0xff]
    %v55 = vld [vmem:[#allocation2 + $0x80] sm:$0xff]
    %v56 = vmax.f32 %v39, %v43
    %v57 = vmax.f32 %v40, %v44
    %v58 = vmax.f32 %v41, %v45
    %v59 = vmax.f32 %v42, %v46
    %v60 = vmax.f32 %v56, %v47
    %v61 = vmax.f32 %v57, %v48
    %v62 = vmax.f32 %v58, %v49
    %v63 = vmax.f32 %v59, %v50
    %v64 = vmax.f32 %v60, %v51
    %v65 = vmax.f32 %v61, %v52
    %v66 = vmax.f32 %v62, %v53
    %v67 = vmax.f32 %v63, %v54
    %v68 = vmax.f32 %v64, %v55
    %v69 = vmax.f32 %v68, %v65
    %v70 = vmax.f32 %v66, %v67
    %v71 = vmax.f32 %v69, %v70
    %72 = vmax.xlane.f32.xlu0 %v71
    %v73 = vpop.xlane.xlu0 %72
    %v74 = vsub.f32 %v39, %v73
    %v75 = vsub.f32 %v40, %v73
    %v76 = vsub.f32 %v41, %v73
    %v77 = vsub.f32 %v42, %v73
    %v78 = vsub.f32 %v43, %v73
    %v79 = vsub.f32 %v44, %v73
    %v80 = vsub.f32 %v45, %v73
    %v81 = vsub.f32 %v46, %v73
    %v82 = vsub.f32 %v47, %v73
    %v83 = vsub.f32 %v48, %v73
    %v84 = vsub.f32 %v49, %v73
    %v85 = vsub.f32 %v50, %v73
    %v86 = vsub.f32 %v51, %v73
    %v87 = vsub.f32 %v52, %v73
    %v88 = vsub.f32 %v53, %v73
    %v89 = vsub.f32 %v54, %v73
    %v90 = vsub.f32 %v55, %v73
    %v91 = vmul.f32 %v74, 1.442695
    %v92 = vpow.pop %v91
    %v93 = vmul.f32 %v75, 1.442695
    %v94 = vpow.pop %v93
    %v95 = vmul.f32 %v76, 1.442695
    %v96 = vpow.pop %v95
    %v97 = vmul.f32 %v77, 1.442695
    %v98 = vpow.pop %v97
    %v99 = vmul.f32 %v78, 1.442695
    %v100 = vpow.pop %v99
    %v101 = vmul.f32 %v79, 1.442695
    %v102 = vpow.pop %v101
    %v103 = vmul.f32 %v80, 1.442695
    %v104 = vpow.pop %v103
    %v105 = vmul.f32 %v81, 1.442695
    %v106 = vpow.pop %v105
    %v107 = vmul.f32 %v82, 1.442695
    %v108 = vpow.pop %v107
    %v109 = vmul.f32 %v83, 1.442695
    %v110 = vpow.pop %v109
    %v111 = vmul.f32 %v84, 1.442695
    %v112 = vpow.pop %v111
    %v113 = vmul.f32 %v85, 1.442695
    %v114 = vpow.pop %v113
    %v115 = vmul.f32 %v86, 1.442695
    %v116 = vpow.pop %v115
    %v117 = vmul.f32 %v87, 1.442695
    %v118 = vpow.pop %v117
    %v119 = vmul.f32 %v88, 1.442695
    %v120 = vpow.pop %v119
    %v121 = vmul.f32 %v89, 1.442695
    %v122 = vpow.pop %v121
    %v123 = vmul.f32 %v90, 1.442695
    %v124 = vpow.pop %v123
    %v125 = vpack.c.bf16 %v92, %v92
    %v126 = vpack.c.bf16 %v94, %v94
    %v127 = vpack.c.bf16 %v96, %v96
    %v128 = vpack.c.bf16 %v98, %v98
    %v129 = vpack.c.bf16 %v100, %v100
    %v130 = vpack.c.bf16 %v102, %v102
    %v131 = vpack.c.bf16 %v104, %v104
    %v132 = vpack.c.bf16 %v106, %v106
    %v133 = vpack.c.bf16 %v108, %v108
    %v134 = vpack.c.bf16 %v110, %v110
    %v135 = vpack.c.bf16 %v112, %v112
    %v136 = vpack.c.bf16 %v114, %v114
    %v137 = vpack.c.bf16 %v116, %v116
    %v138 = vpack.c.bf16 %v118, %v118
    %v139 = vpack.c.bf16 %v120, %v120
    %v140 = vpack.c.bf16 %v122, %v122
    %v141 = vpack.c.bf16 %v124, %v124
    %v142 = vunpack.c.l.bf16 %v125
    %v143 = vunpack.c.l.bf16 %v126
    %v144 = vunpack.c.l.bf16 %v127
    %v145 = vunpack.c.l.bf16 %v128
    %v146 = vunpack.c.l.bf16 %v129
    %v147 = vunpack.c.l.bf16 %v130
    %v148 = vunpack.c.l.bf16 %v131
    %v149 = vunpack.c.l.bf16 %v132
    %v150 = vunpack.c.l.bf16 %v133
    %v151 = vunpack.c.l.bf16 %v134
    %v152 = vunpack.c.l.bf16 %v135
    %v153 = vunpack.c.l.bf16 %v136
    %v154 = vunpack.c.l.bf16 %v137
    %v155 = vunpack.c.l.bf16 %v138
    %v156 = vunpack.c.l.bf16 %v139
    %v157 = vunpack.c.l.bf16 %v140
    %v158 = vunpack.c.l.bf16 %v141
    %v159 = vsub.f32 %v92, %v142
    %v160 = vsub.f32 %v94, %v143
    %v161 = vsub.f32 %v96, %v144
    %v162 = vsub.f32 %v98, %v145
    %v163 = vsub.f32 %v100, %v146
    %v164 = vsub.f32 %v102, %v147
    %v165 = vsub.f32 %v104, %v148
    %v166 = vsub.f32 %v106, %v149
    %v167 = vsub.f32 %v108, %v150
    %v168 = vsub.f32 %v110, %v151
    %v169 = vsub.f32 %v112, %v152
    %v170 = vsub.f32 %v114, %v153
    %v171 = vsub.f32 %v116, %v154
    %v172 = vsub.f32 %v118, %v155
    %v173 = vsub.f32 %v120, %v156
    %v174 = vsub.f32 %v122, %v157
    %v175 = vsub.f32 %v124, %v158
    %v176 = vpack.c.bf16 %v159, %v159
    %v177 = vpack.c.bf16 %v160, %v160
    %v178 = vpack.c.bf16 %v161, %v161
    %v179 = vpack.c.bf16 %v162, %v162
    %v180 = vpack.c.bf16 %v163, %v163
    %v181 = vpack.c.bf16 %v164, %v164
    %v182 = vpack.c.bf16 %v165, %v165
    %v183 = vpack.c.bf16 %v166, %v166
    %v184 = vpack.c.bf16 %v167, %v167
    %v185 = vpack.c.bf16 %v168, %v168
    %v186 = vpack.c.bf16 %v169, %v169
    %v187 = vpack.c.bf16 %v170, %v170
    %v188 = vpack.c.bf16 %v171, %v171
    %v189 = vpack.c.bf16 %v172, %v172
    %v190 = vpack.c.bf16 %v173, %v173
    %v191 = vpack.c.bf16 %v174, %v174
    %v192 = vpack.c.bf16 %v175, %v175
    %v193 = vld [vmem:[#allocation5] sm:$0xff]
    %v194 = vld [vmem:[#allocation5 + $0x8] sm:$0xff]
    %v195 = vld [vmem:[#allocation5 + $0x10] sm:$0xff]
    %v196 = vld [vmem:[#allocation5 + $0x18] sm:$0xff]
    %v197 = vld [vmem:[#allocation5 + $0x20] sm:$0xff]
    %v198 = vld [vmem:[#allocation5 + $0x28] sm:$0xff]
    %v199 = vld [vmem:[#allocation5 + $0x30] sm:$0xff]
    %v200 = vld [vmem:[#allocation5 + $0x38] sm:$0xff]
    %v201 = vld [vmem:[#allocation5 + $0x40] sm:$0xff]
    %v202 = vld [vmem:[#allocation5 + $0x48] sm:$0xff]
    %v203 = vld [vmem:[#allocation5 + $0x50] sm:$0xff]
    %v204 = vld [vmem:[#allocation5 + $0x58] sm:$0xff]
    %v205 = vld [vmem:[#allocation5 + $0x60] sm:$0xff]
    %v206 = vld [vmem:[#allocation5 + $0x68] sm:$0xff]
    %v207 = vld [vmem:[#allocation5 + $0x70] sm:$0xff]
    %v208 = vld [vmem:[#allocation5 + $0x78] sm:$0xff]
    %v209 = vld [vmem:[#allocation5 + $0x80] sm:$0xff]
    %v210 = vld [vmem:[#allocation5 + $0x88] sm:$0xff]
    %v211 = vld [vmem:[#allocation5 + $0x90] sm:$0xff]
    %v212 = vld [vmem:[#allocation5 + $0x98] sm:$0xff]
    %v213 = vld [vmem:[#allocation5 + $0xa0] sm:$0xff]
    %v214 = vld [vmem:[#allocation5 + $0xa8] sm:$0xff]
    %v215 = vld [vmem:[#allocation5 + $0xb0] sm:$0xff]
    %v216 = vld [vmem:[#allocation5 + $0xb8] sm:$0xff]
    %v217 = vld [vmem:[#allocation5 + $0xc0] sm:$0xff]
    %v218 = vld [vmem:[#allocation5 + $0xc8] sm:$0xff]
    %v219 = vld [vmem:[#allocation5 + $0xd0] sm:$0xff]
    %v220 = vld [vmem:[#allocation5 + $0xd8] sm:$0xff]
    %v221 = vld [vmem:[#allocation5 + $0xe0] sm:$0xff]
    %v222 = vld [vmem:[#allocation5 + $0xe8] sm:$0xff]
    %v223 = vld [vmem:[#allocation5 + $0xf0] sm:$0xff]
    %v224 = vld [vmem:[#allocation5 + $0xf8] sm:$0xff]
    %v225 = vld [vmem:[#allocation5 + $0x100] sm:$0xff]
    %v226 = vld [vmem:[#allocation5 + $0x108] sm:$0xff]
    %v227 = vld [vmem:[#allocation5 + $0x110] sm:$0xff]
    %v228 = vld [vmem:[#allocation5 + $0x118] sm:$0xff]
    %v229 = vld [vmem:[#allocation5 + $0x120] sm:$0xff]
    %v230 = vld [vmem:[#allocation5 + $0x128] sm:$0xff]
    %v231 = vld [vmem:[#allocation5 + $0x130] sm:$0xff]
    %v232 = vld [vmem:[#allocation5 + $0x138] sm:$0xff]
    %v233 = vld [vmem:[#allocation5 + $0x140] sm:$0xff]
    %v234 = vld [vmem:[#allocation5 + $0x148] sm:$0xff]
    %v235 = vld [vmem:[#allocation5 + $0x150] sm:$0xff]
    %v236 = vld [vmem:[#allocation5 + $0x158] sm:$0xff]
    %v237 = vld [vmem:[#allocation5 + $0x160] sm:$0xff]
    %v238 = vld [vmem:[#allocation5 + $0x168] sm:$0xff]
    %v239 = vld [vmem:[#allocation5 + $0x170] sm:$0xff]
    %v240 = vld [vmem:[#allocation5 + $0x178] sm:$0xff]
    %v241 = vld [vmem:[#allocation5 + $0x180] sm:$0xff]
    %v242 = vld [vmem:[#allocation5 + $0x188] sm:$0xff]
    %v243 = vld [vmem:[#allocation5 + $0x190] sm:$0xff]
    %v244 = vld [vmem:[#allocation5 + $0x198] sm:$0xff]
    %v245 = vld [vmem:[#allocation5 + $0x1a0] sm:$0xff]
    %v246 = vld [vmem:[#allocation5 + $0x1a8] sm:$0xff]
    %v247 = vld [vmem:[#allocation5 + $0x1b0] sm:$0xff]
    %v248 = vld [vmem:[#allocation5 + $0x1b8] sm:$0xff]
    %v249 = vld [vmem:[#allocation5 + $0x1c0] sm:$0xff]
    %v250 = vld [vmem:[#allocation5 + $0x1c8] sm:$0xff]
    %v251 = vld [vmem:[#allocation5 + $0x1d0] sm:$0xff]
    %v252 = vld [vmem:[#allocation5 + $0x1d8] sm:$0xff]
    %v253 = vld [vmem:[#allocation5 + $0x1e0] sm:$0xff]
    %v254 = vld [vmem:[#allocation5 + $0x1e8] sm:$0xff]
    %v255 = vld [vmem:[#allocation5 + $0x1f0] sm:$0xff]
    %v256 = vld [vmem:[#allocation5 + $0x1f8] sm:$0xff]
    %v257 = vld [vmem:[#allocation5 + $0x200] sm:$0xff]
    %v258 = vld [vmem:[#allocation5 + $0x208] sm:$0xff]
    %v259 = vld [vmem:[#allocation5 + $0x210] sm:$0xff]
    %v260 = vld [vmem:[#allocation5 + $0x218] sm:$0xff]
    %v261 = vld [vmem:[#allocation5 + $0x220] sm:$0xff]
    %v262 = vld [vmem:[#allocation5 + $0x228] sm:$0xff]
    %v263 = vld [vmem:[#allocation5 + $0x230] sm:$0xff]
    %v264 = vld [vmem:[#allocation5 + $0x238] sm:$0xff]
    %v265 = vld [vmem:[#allocation5 + $0x240] sm:$0xff]
    %v266 = vld [vmem:[#allocation5 + $0x248] sm:$0xff]
    %v267 = vld [vmem:[#allocation5 + $0x250] sm:$0xff]
    %v268 = vld [vmem:[#allocation5 + $0x258] sm:$0xff]
    %v269 = vld [vmem:[#allocation5 + $0x260] sm:$0xff]
    %v270 = vld [vmem:[#allocation5 + $0x268] sm:$0xff]
    %v271 = vld [vmem:[#allocation5 + $0x270] sm:$0xff]
    %v272 = vld [vmem:[#allocation5 + $0x278] sm:$0xff]
    %v273 = vld [vmem:[#allocation5 + $0x280] sm:$0xff]
    %v274 = vld [vmem:[#allocation5 + $0x288] sm:$0xff]
    %v275 = vld [vmem:[#allocation5 + $0x290] sm:$0xff]
    %v276 = vld [vmem:[#allocation5 + $0x298] sm:$0xff]
    %v277 = vld [vmem:[#allocation5 + $0x2a0] sm:$0xff]
    %v278 = vld [vmem:[#allocation5 + $0x2a8] sm:$0xff]
    %v279 = vld [vmem:[#allocation5 + $0x2b0] sm:$0xff]
    %v280 = vld [vmem:[#allocation5 + $0x2b8] sm:$0xff]
    %v281 = vld [vmem:[#allocation5 + $0x2c0] sm:$0xff]
    %v282 = vld [vmem:[#allocation5 + $0x2c8] sm:$0xff]
    %v283 = vld [vmem:[#allocation5 + $0x2d0] sm:$0xff]
    %v284 = vld [vmem:[#allocation5 + $0x2d8] sm:$0xff]
    %v285 = vld [vmem:[#allocation5 + $0x2e0] sm:$0xff]
    %v286 = vld [vmem:[#allocation5 + $0x2e8] sm:$0xff]
    %v287 = vld [vmem:[#allocation5 + $0x2f0] sm:$0xff]
    %v288 = vld [vmem:[#allocation5 + $0x2f8] sm:$0xff]
    %v289 = vld [vmem:[#allocation5 + $0x300] sm:$0xff]
    %v290 = vld [vmem:[#allocation5 + $0x308] sm:$0xff]
    %v291 = vld [vmem:[#allocation5 + $0x310] sm:$0xff]
    %v292 = vld [vmem:[#allocation5 + $0x318] sm:$0xff]
    %v293 = vld [vmem:[#allocation5 + $0x320] sm:$0xff]
    %v294 = vld [vmem:[#allocation5 + $0x328] sm:$0xff]
    %v295 = vld [vmem:[#allocation5 + $0x330] sm:$0xff]
    %v296 = vld [vmem:[#allocation5 + $0x338] sm:$0xff]
    %v297 = vld [vmem:[#allocation5 + $0x340] sm:$0xff]
    %v298 = vld [vmem:[#allocation5 + $0x348] sm:$0xff]
    %v299 = vld [vmem:[#allocation5 + $0x350] sm:$0xff]
    %v300 = vld [vmem:[#allocation5 + $0x358] sm:$0xff]
    %v301 = vld [vmem:[#allocation5 + $0x360] sm:$0xff]
    %v302 = vld [vmem:[#allocation5 + $0x368] sm:$0xff]
    %v303 = vld [vmem:[#allocation5 + $0x370] sm:$0xff]
    %v304 = vld [vmem:[#allocation5 + $0x378] sm:$0xff]
    %v305 = vld [vmem:[#allocation5 + $0x380] sm:$0xff]
    %v306 = vld [vmem:[#allocation5 + $0x388] sm:$0xff]
    %v307 = vld [vmem:[#allocation5 + $0x390] sm:$0xff]
    %v308 = vld [vmem:[#allocation5 + $0x398] sm:$0xff]
    %v309 = vld [vmem:[#allocation5 + $0x3a0] sm:$0xff]
    %v310 = vld [vmem:[#allocation5 + $0x3a8] sm:$0xff]
    %v311 = vld [vmem:[#allocation5 + $0x3b0] sm:$0xff]
    %v312 = vld [vmem:[#allocation5 + $0x3b8] sm:$0xff]
    %v313 = vld [vmem:[#allocation5 + $0x3c0] sm:$0xff]
    %v314 = vld [vmem:[#allocation5 + $0x3c8] sm:$0xff]
    %v315 = vld [vmem:[#allocation5 + $0x3d0] sm:$0xff]
    %v316 = vld [vmem:[#allocation5 + $0x3d8] sm:$0xff]
    %v317 = vld [vmem:[#allocation5 + $0x3e0] sm:$0xff]
    %v318 = vld [vmem:[#allocation5 + $0x3e8] sm:$0xff]
    %v319 = vld [vmem:[#allocation5 + $0x3f0] sm:$0xff]
    %v320 = vld [vmem:[#allocation5 + $0x3f8] sm:$0xff]
    %v321 = vld [vmem:[#allocation5 + $0x400] sm:$0xff]
    %v322 = vld [vmem:[#allocation5 + $0x408] sm:$0xff]
    %v323 = vld [vmem:[#allocation5 + $0x410] sm:$0xff]
    %v324 = vld [vmem:[#allocation5 + $0x418] sm:$0xff]
    %v325 = vld [vmem:[#allocation5 + $0x420] sm:$0xff]
    %v326 = vld [vmem:[#allocation5 + $0x428] sm:$0xff]
    %v327 = vld [vmem:[#allocation5 + $0x430] sm:$0xff]
    %v328 = vld [vmem:[#allocation5 + $0x438] sm:$0xff]
    %v329 = vld [vmem:[#allocation5 + $0x440] sm:$0xff]
    %v330 = vld [vmem:[#allocation5 + $0x448] sm:$0xff]
    %v331 = vld [vmem:[#allocation5 + $0x450] sm:$0xff]
    %v332 = vld [vmem:[#allocation5 + $0x458] sm:$0xff]
    %v333 = vld [vmem:[#allocation5 + $0x460] sm:$0xff]
    %v334 = vld [vmem:[#allocation5 + $0x468] sm:$0xff]
    %v335 = vld [vmem:[#allocation5 + $0x470] sm:$0xff]
    %v336 = vld [vmem:[#allocation5 + $0x478] sm:$0xff]
    %v337 = vld [vmem:[#allocation5 + $0x480] sm:$0xff]
    %v338 = vld [vmem:[#allocation5 + $0x488] sm:$0xff]
    %v339 = vld [vmem:[#allocation5 + $0x490] sm:$0xff]
    %v340 = vld [vmem:[#allocation5 + $0x498] sm:$0xff]
    %v341 = vld [vmem:[#allocation5 + $0x4a0] sm:$0xff]
    %v342 = vld [vmem:[#allocation5 + $0x4a8] sm:$0xff]
    %v343 = vld [vmem:[#allocation5 + $0x4b0] sm:$0xff]
    %v344 = vld [vmem:[#allocation5 + $0x4b8] sm:$0xff]
    %v345 = vld [vmem:[#allocation5 + $0x4c0] sm:$0xff]
    %v346 = vld [vmem:[#allocation5 + $0x4c8] sm:$0xff]
    %v347 = vld [vmem:[#allocation5 + $0x4d0] sm:$0xff]
    %v348 = vld [vmem:[#allocation5 + $0x4d8] sm:$0xff]
    %v349 = vld [vmem:[#allocation5 + $0x4e0] sm:$0xff]
    %v350 = vld [vmem:[#allocation5 + $0x4e8] sm:$0xff]
    %v351 = vld [vmem:[#allocation5 + $0x4f0] sm:$0xff]
    %v352 = vld [vmem:[#allocation5 + $0x4f8] sm:$0xff]
    %v353 = vld [vmem:[#allocation5 + $0x500] sm:$0xff]
    %v354 = vld [vmem:[#allocation5 + $0x508] sm:$0xff]
    %v355 = vld [vmem:[#allocation5 + $0x510] sm:$0xff]
    %v356 = vld [vmem:[#allocation5 + $0x518] sm:$0xff]
    %v357 = vld [vmem:[#allocation5 + $0x520] sm:$0xff]
    %v358 = vld [vmem:[#allocation5 + $0x528] sm:$0xff]
    %v359 = vld [vmem:[#allocation5 + $0x530] sm:$0xff]
    %v360 = vld [vmem:[#allocation5 + $0x538] sm:$0xff]
    %v361 = vld [vmem:[#allocation5 + $0x540] sm:$0xff]
    %v362 = vld [vmem:[#allocation5 + $0x548] sm:$0xff]
    %v363 = vld [vmem:[#allocation5 + $0x550] sm:$0xff]
    %v364 = vld [vmem:[#allocation5 + $0x558] sm:$0xff]
    %v365 = vld [vmem:[#allocation5 + $0x560] sm:$0xff]
    %v366 = vld [vmem:[#allocation5 + $0x568] sm:$0xff]
    %v367 = vld [vmem:[#allocation5 + $0x570] sm:$0xff]
    %v368 = vld [vmem:[#allocation5 + $0x578] sm:$0xff]
    %v369 = vld [vmem:[#allocation5 + $0x580] sm:$0xff]
    %v370 = vld [vmem:[#allocation5 + $0x588] sm:$0xff]
    %v371 = vld [vmem:[#allocation5 + $0x590] sm:$0xff]
    %v372 = vld [vmem:[#allocation5 + $0x598] sm:$0xff]
    %v373 = vld [vmem:[#allocation5 + $0x5a0] sm:$0xff]
    %v374 = vld [vmem:[#allocation5 + $0x5a8] sm:$0xff]
    %v375 = vld [vmem:[#allocation5 + $0x5b0] sm:$0xff]
    %v376 = vld [vmem:[#allocation5 + $0x5b8] sm:$0xff]
    %v377 = vld [vmem:[#allocation5 + $0x5c0] sm:$0xff]
    %v378 = vld [vmem:[#allocation5 + $0x5c8] sm:$0xff]
    %v379 = vld [vmem:[#allocation5 + $0x5d0] sm:$0xff]
    %v380 = vld [vmem:[#allocation5 + $0x5d8] sm:$0xff]
    %v381 = vld [vmem:[#allocation5 + $0x5e0] sm:$0xff]
    %v382 = vld [vmem:[#allocation5 + $0x5e8] sm:$0xff]
    %v383 = vld [vmem:[#allocation5 + $0x5f0] sm:$0xff]
    %v384 = vld [vmem:[#allocation5 + $0x5f8] sm:$0xff]
    %v385 = vld [vmem:[#allocation5 + $0x600] sm:$0xff]
    %v386 = vld [vmem:[#allocation5 + $0x608] sm:$0xff]
    %v387 = vld [vmem:[#allocation5 + $0x610] sm:$0xff]
    %v388 = vld [vmem:[#allocation5 + $0x618] sm:$0xff]
    %v389 = vld [vmem:[#allocation5 + $0x620] sm:$0xff]
    %v390 = vld [vmem:[#allocation5 + $0x628] sm:$0xff]
    %v391 = vld [vmem:[#allocation5 + $0x630] sm:$0xff]
    %v392 = vld [vmem:[#allocation5 + $0x638] sm:$0xff]
    %v393 = vld [vmem:[#allocation5 + $0x640] sm:$0xff]
    %v394 = vld [vmem:[#allocation5 + $0x648] sm:$0xff]
    %v395 = vld [vmem:[#allocation5 + $0x650] sm:$0xff]
    %v396 = vld [vmem:[#allocation5 + $0x658] sm:$0xff]
    %v397 = vld [vmem:[#allocation5 + $0x660] sm:$0xff]
    %v398 = vld [vmem:[#allocation5 + $0x668] sm:$0xff]
    %v399 = vld [vmem:[#allocation5 + $0x670] sm:$0xff]
    %v400 = vld [vmem:[#allocation5 + $0x678] sm:$0xff]
    %v401 = vld [vmem:[#allocation5 + $0x680] sm:$0xff]
    %v402 = vld [vmem:[#allocation5 + $0x688] sm:$0xff]
    %v403 = vld [vmem:[#allocation5 + $0x690] sm:$0xff]
    %v404 = vld [vmem:[#allocation5 + $0x698] sm:$0xff]
    %v405 = vld [vmem:[#allocation5 + $0x6a0] sm:$0xff]
    %v406 = vld [vmem:[#allocation5 + $0x6a8] sm:$0xff]
    %v407 = vld [vmem:[#allocation5 + $0x6b0] sm:$0xff]
    %v408 = vld [vmem:[#allocation5 + $0x6b8] sm:$0xff]
    %v409 = vld [vmem:[#allocation5 + $0x6c0] sm:$0xff]
    %v410 = vld [vmem:[#allocation5 + $0x6c8] sm:$0xff]
    %v411 = vld [vmem:[#allocation5 + $0x6d0] sm:$0xff]
    %v412 = vld [vmem:[#allocation5 + $0x6d8] sm:$0xff]
    %v413 = vld [vmem:[#allocation5 + $0x6e0] sm:$0xff]
    %v414 = vld [vmem:[#allocation5 + $0x6e8] sm:$0xff]
    %v415 = vld [vmem:[#allocation5 + $0x6f0] sm:$0xff]
    %v416 = vld [vmem:[#allocation5 + $0x6f8] sm:$0xff]
    %v417 = vld [vmem:[#allocation5 + $0x700] sm:$0xff]
    %v418 = vld [vmem:[#allocation5 + $0x708] sm:$0xff]
    %v419 = vld [vmem:[#allocation5 + $0x710] sm:$0xff]
    %v420 = vld [vmem:[#allocation5 + $0x718] sm:$0xff]
    %v421 = vld [vmem:[#allocation5 + $0x720] sm:$0xff]
    %v422 = vld [vmem:[#allocation5 + $0x728] sm:$0xff]
    %v423 = vld [vmem:[#allocation5 + $0x730] sm:$0xff]
    %v424 = vld [vmem:[#allocation5 + $0x738] sm:$0xff]
    %v425 = vld [vmem:[#allocation5 + $0x740] sm:$0xff]
    %v426 = vld [vmem:[#allocation5 + $0x748] sm:$0xff]
    %v427 = vld [vmem:[#allocation5 + $0x750] sm:$0xff]
    %v428 = vld [vmem:[#allocation5 + $0x758] sm:$0xff]
    %v429 = vld [vmem:[#allocation5 + $0x760] sm:$0xff]
    %v430 = vld [vmem:[#allocation5 + $0x768] sm:$0xff]
    %v431 = vld [vmem:[#allocation5 + $0x770] sm:$0xff]
    %v432 = vld [vmem:[#allocation5 + $0x778] sm:$0xff]
    %v433 = vld [vmem:[#allocation5 + $0x780] sm:$0xff]
    %v434 = vld [vmem:[#allocation5 + $0x788] sm:$0xff]
    %v435 = vld [vmem:[#allocation5 + $0x790] sm:$0xff]
    %v436 = vld [vmem:[#allocation5 + $0x798] sm:$0xff]
    %v437 = vld [vmem:[#allocation5 + $0x7a0] sm:$0xff]
    %v438 = vld [vmem:[#allocation5 + $0x7a8] sm:$0xff]
    %v439 = vld [vmem:[#allocation5 + $0x7b0] sm:$0xff]
    %v440 = vld [vmem:[#allocation5 + $0x7b8] sm:$0xff]
    %v441 = vld [vmem:[#allocation5 + $0x7c0] sm:$0xff]
    %v442 = vld [vmem:[#allocation5 + $0x7c8] sm:$0xff]
    %v443 = vld [vmem:[#allocation5 + $0x7d0] sm:$0xff]
    %v444 = vld [vmem:[#allocation5 + $0x7d8] sm:$0xff]
    %v445 = vld [vmem:[#allocation5 + $0x7e0] sm:$0xff]
    %v446 = vld [vmem:[#allocation5 + $0x7e8] sm:$0xff]
    %v447 = vld [vmem:[#allocation5 + $0x7f0] sm:$0xff]
    %v448 = vld [vmem:[#allocation5 + $0x7f8] sm:$0xff]
    %v449 = vld [vmem:[#allocation5 + $0x800] sm:$0xff]
    %v450 = vld [vmem:[#allocation5 + $0x808] sm:$0xff]
    %v451 = vld [vmem:[#allocation5 + $0x810] sm:$0xff]
    %v452 = vld [vmem:[#allocation5 + $0x818] sm:$0xff]
    %v453 = vld [vmem:[#allocation5 + $0x820] sm:$0xff]
    %v454 = vld [vmem:[#allocation5 + $0x828] sm:$0xff]
    %v455 = vld [vmem:[#allocation5 + $0x830] sm:$0xff]
    %v456 = vld [vmem:[#allocation5 + $0x838] sm:$0xff]
    %v457 = vld [vmem:[#allocation5 + $0x840] sm:$0xff]
    %v458 = vld [vmem:[#allocation5 + $0x848] sm:$0xff]
    %v459 = vld [vmem:[#allocation5 + $0x850] sm:$0xff]
    %v460 = vld [vmem:[#allocation5 + $0x858] sm:$0xff]
    %v461 = vld [vmem:[#allocation5 + $0x860] sm:$0xff]
    %v462 = vld [vmem:[#allocation5 + $0x868] sm:$0xff]
    %v463 = vld [vmem:[#allocation5 + $0x870] sm:$0xff]
    %v464 = vld [vmem:[#allocation5 + $0x878] sm:$0xff]
    %v737 = vunpack.c.l.b16 %v193
    %v738 = vunpack.c.h.b16 %v193
    %v739 = vunpack.c.l.b16 %v194
    %v740 = vunpack.c.h.b16 %v194
    %v741 = vunpack.c.l.b16 %v195
    %v742 = vunpack.c.h.b16 %v195
    %v743 = vunpack.c.l.b16 %v196
    %v744 = vunpack.c.h.b16 %v196
    %v745 = vunpack.c.l.b16 %v197
    %v746 = vunpack.c.h.b16 %v197
    %v747 = vunpack.c.l.b16 %v198
    %v748 = vunpack.c.h.b16 %v198
    %v749 = vunpack.c.l.b16 %v199
    %v750 = vunpack.c.h.b16 %v199
    %v751 = vunpack.c.l.b16 %v200
    %v752 = vunpack.c.h.b16 %v200
    %v753 = vunpack.c.l.b16 %v201
    %v754 = vunpack.c.h.b16 %v201
    %v755 = vunpack.c.l.b16 %v202
    %v756 = vunpack.c.h.b16 %v202
    %v757 = vunpack.c.l.b16 %v203
    %v758 = vunpack.c.h.b16 %v203
    %v759 = vunpack.c.l.b16 %v204
    %v760 = vunpack.c.h.b16 %v204
    %v761 = vunpack.c.l.b16 %v205
    %v762 = vunpack.c.h.b16 %v205
    %v763 = vunpack.c.l.b16 %v206
    %v764 = vunpack.c.h.b16 %v206
    %v765 = vunpack.c.l.b16 %v207
    %v766 = vunpack.c.h.b16 %v207
    %v767 = vunpack.c.l.b16 %v208
    %v768 = vunpack.c.h.b16 %v208
    %v769 = vunpack.c.l.b16 %v209
    %v770 = vunpack.c.h.b16 %v209
    %v771 = vunpack.c.l.b16 %v210
    %v772 = vunpack.c.h.b16 %v210
    %v773 = vunpack.c.l.b16 %v211
    %v774 = vunpack.c.h.b16 %v211
    %v775 = vunpack.c.l.b16 %v212
    %v776 = vunpack.c.h.b16 %v212
    %v777 = vunpack.c.l.b16 %v213
    %v778 = vunpack.c.h.b16 %v213
    %v779 = vunpack.c.l.b16 %v214
    %v780 = vunpack.c.h.b16 %v214
    %v781 = vunpack.c.l.b16 %v215
    %v782 = vunpack.c.h.b16 %v215
    %v783 = vunpack.c.l.b16 %v216
    %v784 = vunpack.c.h.b16 %v216
    %v785 = vunpack.c.l.b16 %v217
    %v786 = vunpack.c.h.b16 %v217
    %v787 = vunpack.c.l.b16 %v218
    %v788 = vunpack.c.h.b16 %v218
    %v789 = vunpack.c.l.b16 %v219
    %v790 = vunpack.c.h.b16 %v219
    %v791 = vunpack.c.l.b16 %v220
    %v792 = vunpack.c.h.b16 %v220
    %v793 = vunpack.c.l.b16 %v221
    %v794 = vunpack.c.h.b16 %v221
    %v795 = vunpack.c.l.b16 %v222
    %v796 = vunpack.c.h.b16 %v222
    %v797 = vunpack.c.l.b16 %v223
    %v798 = vunpack.c.h.b16 %v223
    %v799 = vunpack.c.l.b16 %v224
    %v800 = vunpack.c.h.b16 %v224
    %v801 = vunpack.c.l.b16 %v225
    %v802 = vunpack.c.h.b16 %v225
    %v803 = vunpack.c.l.b16 %v226
    %v804 = vunpack.c.h.b16 %v226
    %v805 = vunpack.c.l.b16 %v227
    %v806 = vunpack.c.h.b16 %v227
    %v807 = vunpack.c.l.b16 %v228
    %v808 = vunpack.c.h.b16 %v228
    %v809 = vunpack.c.l.b16 %v229
    %v810 = vunpack.c.h.b16 %v229
    %v811 = vunpack.c.l.b16 %v230
    %v812 = vunpack.c.h.b16 %v230
    %v813 = vunpack.c.l.b16 %v231
    %v814 = vunpack.c.h.b16 %v231
    %v815 = vunpack.c.l.b16 %v232
    %v816 = vunpack.c.h.b16 %v232
    %v817 = vunpack.c.l.b16 %v233
    %v818 = vunpack.c.h.b16 %v233
    %v819 = vunpack.c.l.b16 %v234
    %v820 = vunpack.c.h.b16 %v234
    %v821 = vunpack.c.l.b16 %v235
    %v822 = vunpack.c.h.b16 %v235
    %v823 = vunpack.c.l.b16 %v236
    %v824 = vunpack.c.h.b16 %v236
    %v825 = vunpack.c.l.b16 %v237
    %v826 = vunpack.c.h.b16 %v237
    %v827 = vunpack.c.l.b16 %v238
    %v828 = vunpack.c.h.b16 %v238
    %v829 = vunpack.c.l.b16 %v239
    %v830 = vunpack.c.h.b16 %v239
    %v831 = vunpack.c.l.b16 %v240
    %v832 = vunpack.c.h.b16 %v240
    %v833 = vunpack.c.l.b16 %v241
    %v834 = vunpack.c.h.b16 %v241
    %v835 = vunpack.c.l.b16 %v242
    %v836 = vunpack.c.h.b16 %v242
    %v837 = vunpack.c.l.b16 %v243
    %v838 = vunpack.c.h.b16 %v243
    %v839 = vunpack.c.l.b16 %v244
    %v840 = vunpack.c.h.b16 %v244
    %v841 = vunpack.c.l.b16 %v245
    %v842 = vunpack.c.h.b16 %v245
    %v843 = vunpack.c.l.b16 %v246
    %v844 = vunpack.c.h.b16 %v246
    %v845 = vunpack.c.l.b16 %v247
    %v846 = vunpack.c.h.b16 %v247
    %v847 = vunpack.c.l.b16 %v248
    %v848 = vunpack.c.h.b16 %v248
    %v849 = vunpack.c.l.b16 %v249
    %v850 = vunpack.c.h.b16 %v249
    %v851 = vunpack.c.l.b16 %v250
    %v852 = vunpack.c.h.b16 %v250
    %v853 = vunpack.c.l.b16 %v251
    %v854 = vunpack.c.h.b16 %v251
    %v855 = vunpack.c.l.b16 %v252
    %v856 = vunpack.c.h.b16 %v252
    %v857 = vunpack.c.l.b16 %v253
    %v858 = vunpack.c.h.b16 %v253
    %v859 = vunpack.c.l.b16 %v254
    %v860 = vunpack.c.h.b16 %v254
    %v861 = vunpack.c.l.b16 %v255
    %v862 = vunpack.c.h.b16 %v255
    %v863 = vunpack.c.l.b16 %v256
    %v864 = vunpack.c.h.b16 %v256
    %v865 = vunpack.c.l.b16 %v257
    %v866 = vunpack.c.h.b16 %v257
    %v867 = vunpack.c.l.b16 %v258
    %v868 = vunpack.c.h.b16 %v258
    %v869 = vunpack.c.l.b16 %v259
    %v870 = vunpack.c.h.b16 %v259
    %v871 = vunpack.c.l.b16 %v260
    %v872 = vunpack.c.h.b16 %v260
    %v873 = vunpack.c.l.b16 %v261
    %v874 = vunpack.c.h.b16 %v261
    %v875 = vunpack.c.l.b16 %v262
    %v876 = vunpack.c.h.b16 %v262
    %v877 = vunpack.c.l.b16 %v263
    %v878 = vunpack.c.h.b16 %v263
    %v879 = vunpack.c.l.b16 %v264
    %v880 = vunpack.c.h.b16 %v264
    %v881 = vunpack.c.l.b16 %v265
    %v882 = vunpack.c.h.b16 %v265
    %v883 = vunpack.c.l.b16 %v266
    %v884 = vunpack.c.h.b16 %v266
    %v885 = vunpack.c.l.b16 %v267
    %v886 = vunpack.c.h.b16 %v267
    %v887 = vunpack.c.l.b16 %v268
    %v888 = vunpack.c.h.b16 %v268
    %v889 = vunpack.c.l.b16 %v269
    %v890 = vunpack.c.h.b16 %v269
    %v891 = vunpack.c.l.b16 %v270
    %v892 = vunpack.c.h.b16 %v270
    %v893 = vunpack.c.l.b16 %v271
    %v894 = vunpack.c.h.b16 %v271
    %v895 = vunpack.c.l.b16 %v272
    %v896 = vunpack.c.h.b16 %v272
    %v897 = vunpack.c.l.b16 %v273
    %v898 = vunpack.c.h.b16 %v273
    %v899 = vunpack.c.l.b16 %v274
    %v900 = vunpack.c.h.b16 %v274
    %v901 = vunpack.c.l.b16 %v275
    %v902 = vunpack.c.h.b16 %v275
    %v903 = vunpack.c.l.b16 %v276
    %v904 = vunpack.c.h.b16 %v276
    %v905 = vunpack.c.l.b16 %v277
    %v906 = vunpack.c.h.b16 %v277
    %v907 = vunpack.c.l.b16 %v278
    %v908 = vunpack.c.h.b16 %v278
    %v909 = vunpack.c.l.b16 %v279
    %v910 = vunpack.c.h.b16 %v279
    %v911 = vunpack.c.l.b16 %v280
    %v912 = vunpack.c.h.b16 %v280
    %v913 = vunpack.c.l.b16 %v281
    %v914 = vunpack.c.h.b16 %v281
    %v915 = vunpack.c.l.b16 %v282
    %v916 = vunpack.c.h.b16 %v282
    %v917 = vunpack.c.l.b16 %v283
    %v918 = vunpack.c.h.b16 %v283
    %v919 = vunpack.c.l.b16 %v284
    %v920 = vunpack.c.h.b16 %v284
    %v921 = vunpack.c.l.b16 %v285
    %v922 = vunpack.c.h.b16 %v285
    %v923 = vunpack.c.l.b16 %v286
    %v924 = vunpack.c.h.b16 %v286
    %v925 = vunpack.c.l.b16 %v287
    %v926 = vunpack.c.h.b16 %v287
    %v927 = vunpack.c.l.b16 %v288
    %v928 = vunpack.c.h.b16 %v288
    %v929 = vunpack.c.l.b16 %v289
    %v930 = vunpack.c.h.b16 %v289
    %v931 = vunpack.c.l.b16 %v290
    %v932 = vunpack.c.h.b16 %v290
    %v933 = vunpack.c.l.b16 %v291
    %v934 = vunpack.c.h.b16 %v291
    %v935 = vunpack.c.l.b16 %v292
    %v936 = vunpack.c.h.b16 %v292
    %v937 = vunpack.c.l.b16 %v293
    %v938 = vunpack.c.h.b16 %v293
    %v939 = vunpack.c.l.b16 %v294
    %v940 = vunpack.c.h.b16 %v294
    %v941 = vunpack.c.l.b16 %v295
    %v942 = vunpack.c.h.b16 %v295
    %v943 = vunpack.c.l.b16 %v296
    %v944 = vunpack.c.h.b16 %v296
    %v945 = vunpack.c.l.b16 %v297
    %v946 = vunpack.c.h.b16 %v297
    %v947 = vunpack.c.l.b16 %v298
    %v948 = vunpack.c.h.b16 %v298
    %v949 = vunpack.c.l.b16 %v299
    %v950 = vunpack.c.h.b16 %v299
    %v951 = vunpack.c.l.b16 %v300
    %v952 = vunpack.c.h.b16 %v300
    %v953 = vunpack.c.l.b16 %v301
    %v954 = vunpack.c.h.b16 %v301
    %v955 = vunpack.c.l.b16 %v302
    %v956 = vunpack.c.h.b16 %v302
    %v957 = vunpack.c.l.b16 %v303
    %v958 = vunpack.c.h.b16 %v303
    %v959 = vunpack.c.l.b16 %v304
    %v960 = vunpack.c.h.b16 %v304
    %v961 = vunpack.c.l.b16 %v305
    %v962 = vunpack.c.h.b16 %v305
    %v963 = vunpack.c.l.b16 %v306
    %v964 = vunpack.c.h.b16 %v306
    %v965 = vunpack.c.l.b16 %v307
    %v966 = vunpack.c.h.b16 %v307
    %v967 = vunpack.c.l.b16 %v308
    %v968 = vunpack.c.h.b16 %v308
    %v969 = vunpack.c.l.b16 %v309
    %v970 = vunpack.c.h.b16 %v309
    %v971 = vunpack.c.l.b16 %v310
    %v972 = vunpack.c.h.b16 %v310
    %v973 = vunpack.c.l.b16 %v311
    %v974 = vunpack.c.h.b16 %v311
    %v975 = vunpack.c.l.b16 %v312
    %v976 = vunpack.c.h.b16 %v312
    %v977 = vunpack.c.l.b16 %v313
    %v978 = vunpack.c.h.b16 %v313
    %v979 = vunpack.c.l.b16 %v314
    %v980 = vunpack.c.h.b16 %v314
    %v981 = vunpack.c.l.b16 %v315
    %v982 = vunpack.c.h.b16 %v315
    %v983 = vunpack.c.l.b16 %v316
    %v984 = vunpack.c.h.b16 %v316
    %v985 = vunpack.c.l.b16 %v317
    %v986 = vunpack.c.h.b16 %v317
    %v987 = vunpack.c.l.b16 %v318
    %v988 = vunpack.c.h.b16 %v318
    %v989 = vunpack.c.l.b16 %v319
    %v990 = vunpack.c.h.b16 %v319
    %v991 = vunpack.c.l.b16 %v320
    %v992 = vunpack.c.h.b16 %v320
    %v993 = vunpack.c.l.b16 %v321
    %v994 = vunpack.c.h.b16 %v321
    %v995 = vunpack.c.l.b16 %v322
    %v996 = vunpack.c.h.b16 %v322
    %v997 = vunpack.c.l.b16 %v323
    %v998 = vunpack.c.h.b16 %v323
    %v999 = vunpack.c.l.b16 %v324
    %v1000 = vunpack.c.h.b16 %v324
    %v1001 = vunpack.c.l.b16 %v325
    %v1002 = vunpack.c.h.b16 %v325
    %v1003 = vunpack.c.l.b16 %v326
    %v1004 = vunpack.c.h.b16 %v326
    %v1005 = vunpack.c.l.b16 %v327
    %v1006 = vunpack.c.h.b16 %v327
    %v1007 = vunpack.c.l.b16 %v328
    %v1008 = vunpack.c.h.b16 %v328
    %v1009 = vunpack.c.l.b16 %v329
    %v1010 = vunpack.c.h.b16 %v329
    %v1011 = vunpack.c.l.b16 %v330
    %v1012 = vunpack.c.h.b16 %v330
    %v1013 = vunpack.c.l.b16 %v331
    %v1014 = vunpack.c.h.b16 %v331
    %v1015 = vunpack.c.l.b16 %v332
    %v1016 = vunpack.c.h.b16 %v332
    %v1017 = vunpack.c.l.b16 %v333
    %v1018 = vunpack.c.h.b16 %v333
    %v1019 = vunpack.c.l.b16 %v334
    %v1020 = vunpack.c.h.b16 %v334
    %v1021 = vunpack.c.l.b16 %v335
    %v1022 = vunpack.c.h.b16 %v335
    %v1023 = vunpack.c.l.b16 %v336
    %v1024 = vunpack.c.h.b16 %v336
    %v1025 = vunpack.c.l.b16 %v337
    %v1026 = vunpack.c.h.b16 %v337
    %v1027 = vunpack.c.l.b16 %v338
    %v1028 = vunpack.c.h.b16 %v338
    %v1029 = vunpack.c.l.b16 %v339
    %v1030 = vunpack.c.h.b16 %v339
    %v1031 = vunpack.c.l.b16 %v340
    %v1032 = vunpack.c.h.b16 %v340
    %v1033 = vunpack.c.l.b16 %v341
    %v1034 = vunpack.c.h.b16 %v341
    %v1035 = vunpack.c.l.b16 %v342
    %v1036 = vunpack.c.h.b16 %v342
    %v1037 = vunpack.c.l.b16 %v343
    %v1038 = vunpack.c.h.b16 %v343
    %v1039 = vunpack.c.l.b16 %v344
    %v1040 = vunpack.c.h.b16 %v344
    %v1041 = vunpack.c.l.b16 %v345
    %v1042 = vunpack.c.h.b16 %v345
    %v1043 = vunpack.c.l.b16 %v346
    %v1044 = vunpack.c.h.b16 %v346
    %v1045 = vunpack.c.l.b16 %v347
    %v1046 = vunpack.c.h.b16 %v347
    %v1047 = vunpack.c.l.b16 %v348
    %v1048 = vunpack.c.h.b16 %v348
    %v1049 = vunpack.c.l.b16 %v349
    %v1050 = vunpack.c.h.b16 %v349
    %v1051 = vunpack.c.l.b16 %v350
    %v1052 = vunpack.c.h.b16 %v350
    %v1053 = vunpack.c.l.b16 %v351
    %v1054 = vunpack.c.h.b16 %v351
    %v1055 = vunpack.c.l.b16 %v352
    %v1056 = vunpack.c.h.b16 %v352
    %v1057 = vunpack.c.l.b16 %v353
    %v1058 = vunpack.c.h.b16 %v353
    %v1059 = vunpack.c.l.b16 %v354
    %v1060 = vunpack.c.h.b16 %v354
    %v1061 = vunpack.c.l.b16 %v355
    %v1062 = vunpack.c.h.b16 %v355
    %v1063 = vunpack.c.l.b16 %v356
    %v1064 = vunpack.c.h.b16 %v356
    %v1065 = vunpack.c.l.b16 %v357
    %v1066 = vunpack.c.h.b16 %v357
    %v1067 = vunpack.c.l.b16 %v358
    %v1068 = vunpack.c.h.b16 %v358
    %v1069 = vunpack.c.l.b16 %v359
    %v1070 = vunpack.c.h.b16 %v359
    %v1071 = vunpack.c.l.b16 %v360
    %v1072 = vunpack.c.h.b16 %v360
    %v1073 = vunpack.c.l.b16 %v361
    %v1074 = vunpack.c.h.b16 %v361
    %v1075 = vunpack.c.l.b16 %v362
    %v1076 = vunpack.c.h.b16 %v362
    %v1077 = vunpack.c.l.b16 %v363
    %v1078 = vunpack.c.h.b16 %v363
    %v1079 = vunpack.c.l.b16 %v364
    %v1080 = vunpack.c.h.b16 %v364
    %v1081 = vunpack.c.l.b16 %v365
    %v1082 = vunpack.c.h.b16 %v365
    %v1083 = vunpack.c.l.b16 %v366
    %v1084 = vunpack.c.h.b16 %v366
    %v1085 = vunpack.c.l.b16 %v367
    %v1086 = vunpack.c.h.b16 %v367
    %v1087 = vunpack.c.l.b16 %v368
    %v1088 = vunpack.c.h.b16 %v368
    %v1089 = vunpack.c.l.b16 %v369
    %v1090 = vunpack.c.h.b16 %v369
    %v1091 = vunpack.c.l.b16 %v370
    %v1092 = vunpack.c.h.b16 %v370
    %v1093 = vunpack.c.l.b16 %v371
    %v1094 = vunpack.c.h.b16 %v371
    %v1095 = vunpack.c.l.b16 %v372
    %v1096 = vunpack.c.h.b16 %v372
    %v1097 = vunpack.c.l.b16 %v373
    %v1098 = vunpack.c.h.b16 %v373
    %v1099 = vunpack.c.l.b16 %v374
    %v1100 = vunpack.c.h.b16 %v374
    %v1101 = vunpack.c.l.b16 %v375
    %v1102 = vunpack.c.h.b16 %v375
    %v1103 = vunpack.c.l.b16 %v376
    %v1104 = vunpack.c.h.b16 %v376
    %v1105 = vunpack.c.l.b16 %v377
    %v1106 = vunpack.c.h.b16 %v377
    %v1107 = vunpack.c.l.b16 %v378
    %v1108 = vunpack.c.h.b16 %v378
    %v1109 = vunpack.c.l.b16 %v379
    %v1110 = vunpack.c.h.b16 %v379
    %v1111 = vunpack.c.l.b16 %v380
    %v1112 = vunpack.c.h.b16 %v380
    %v1113 = vunpack.c.l.b16 %v381
    %v1114 = vunpack.c.h.b16 %v381
    %v1115 = vunpack.c.l.b16 %v382
    %v1116 = vunpack.c.h.b16 %v382
    %v1117 = vunpack.c.l.b16 %v383
    %v1118 = vunpack.c.h.b16 %v383
    %v1119 = vunpack.c.l.b16 %v384
    %v1120 = vunpack.c.h.b16 %v384
    %v1121 = vunpack.c.l.b16 %v385
    %v1122 = vunpack.c.h.b16 %v385
    %v1123 = vunpack.c.l.b16 %v386
    %v1124 = vunpack.c.h.b16 %v386
    %v1125 = vunpack.c.l.b16 %v387
    %v1126 = vunpack.c.h.b16 %v387
    %v1127 = vunpack.c.l.b16 %v388
    %v1128 = vunpack.c.h.b16 %v388
    %v1129 = vunpack.c.l.b16 %v389
    %v1130 = vunpack.c.h.b16 %v389
    %v1131 = vunpack.c.l.b16 %v390
    %v1132 = vunpack.c.h.b16 %v390
    %v1133 = vunpack.c.l.b16 %v391
    %v1134 = vunpack.c.h.b16 %v391
    %v1135 = vunpack.c.l.b16 %v392
    %v1136 = vunpack.c.h.b16 %v392
    %v1137 = vunpack.c.l.b16 %v393
    %v1138 = vunpack.c.h.b16 %v393
    %v1139 = vunpack.c.l.b16 %v394
    %v1140 = vunpack.c.h.b16 %v394
    %v1141 = vunpack.c.l.b16 %v395
    %v1142 = vunpack.c.h.b16 %v395
    %v1143 = vunpack.c.l.b16 %v396
    %v1144 = vunpack.c.h.b16 %v396
    %v1145 = vunpack.c.l.b16 %v397
    %v1146 = vunpack.c.h.b16 %v397
    %v1147 = vunpack.c.l.b16 %v398
    %v1148 = vunpack.c.h.b16 %v398
    %v1149 = vunpack.c.l.b16 %v399
    %v1150 = vunpack.c.h.b16 %v399
    %v1151 = vunpack.c.l.b16 %v400
    %v1152 = vunpack.c.h.b16 %v400
    %v1153 = vunpack.c.l.b16 %v401
    %v1154 = vunpack.c.h.b16 %v401
    %v1155 = vunpack.c.l.b16 %v402
    %v1156 = vunpack.c.h.b16 %v402
    %v1157 = vunpack.c.l.b16 %v403
    %v1158 = vunpack.c.h.b16 %v403
    %v1159 = vunpack.c.l.b16 %v404
    %v1160 = vunpack.c.h.b16 %v404
    %v1161 = vunpack.c.l.b16 %v405
    %v1162 = vunpack.c.h.b16 %v405
    %v1163 = vunpack.c.l.b16 %v406
    %v1164 = vunpack.c.h.b16 %v406
    %v1165 = vunpack.c.l.b16 %v407
    %v1166 = vunpack.c.h.b16 %v407
    %v1167 = vunpack.c.l.b16 %v408
    %v1168 = vunpack.c.h.b16 %v408
    %v1169 = vunpack.c.l.b16 %v409
    %v1170 = vunpack.c.h.b16 %v409
    %v1171 = vunpack.c.l.b16 %v410
    %v1172 = vunpack.c.h.b16 %v410
    %v1173 = vunpack.c.l.b16 %v411
    %v1174 = vunpack.c.h.b16 %v411
    %v1175 = vunpack.c.l.b16 %v412
    %v1176 = vunpack.c.h.b16 %v412
    %v1177 = vunpack.c.l.b16 %v413
    %v1178 = vunpack.c.h.b16 %v413
    %v1179 = vunpack.c.l.b16 %v414
    %v1180 = vunpack.c.h.b16 %v414
    %v1181 = vunpack.c.l.b16 %v415
    %v1182 = vunpack.c.h.b16 %v415
    %v1183 = vunpack.c.l.b16 %v416
    %v1184 = vunpack.c.h.b16 %v416
    %v1185 = vunpack.c.l.b16 %v417
    %v1186 = vunpack.c.h.b16 %v417
    %v1187 = vunpack.c.l.b16 %v418
    %v1188 = vunpack.c.h.b16 %v418
    %v1189 = vunpack.c.l.b16 %v419
    %v1190 = vunpack.c.h.b16 %v419
    %v1191 = vunpack.c.l.b16 %v420
    %v1192 = vunpack.c.h.b16 %v420
    %v1193 = vunpack.c.l.b16 %v421
    %v1194 = vunpack.c.h.b16 %v421
    %v1195 = vunpack.c.l.b16 %v422
    %v1196 = vunpack.c.h.b16 %v422
    %v1197 = vunpack.c.l.b16 %v423
    %v1198 = vunpack.c.h.b16 %v423
    %v1199 = vunpack.c.l.b16 %v424
    %v1200 = vunpack.c.h.b16 %v424
    %v1201 = vunpack.c.l.b16 %v425
    %v1202 = vunpack.c.h.b16 %v425
    %v1203 = vunpack.c.l.b16 %v426
    %v1204 = vunpack.c.h.b16 %v426
    %v1205 = vunpack.c.l.b16 %v427
    %v1206 = vunpack.c.h.b16 %v427
    %v1207 = vunpack.c.l.b16 %v428
    %v1208 = vunpack.c.h.b16 %v428
    %v1209 = vunpack.c.l.b16 %v429
    %v1210 = vunpack.c.h.b16 %v429
    %v1211 = vunpack.c.l.b16 %v430
    %v1212 = vunpack.c.h.b16 %v430
    %v1213 = vunpack.c.l.b16 %v431
    %v1214 = vunpack.c.h.b16 %v431
    %v1215 = vunpack.c.l.b16 %v432
    %v1216 = vunpack.c.h.b16 %v432
    %v1217 = vunpack.c.l.b16 %v433
    %v1218 = vunpack.c.h.b16 %v433
    %v1219 = vunpack.c.l.b16 %v434
    %v1220 = vunpack.c.h.b16 %v434
    %v1221 = vunpack.c.l.b16 %v435
    %v1222 = vunpack.c.h.b16 %v435
    %v1223 = vunpack.c.l.b16 %v436
    %v1224 = vunpack.c.h.b16 %v436
    %v1225 = vunpack.c.l.b16 %v437
    %v1226 = vunpack.c.h.b16 %v437
    %v1227 = vunpack.c.l.b16 %v438
    %v1228 = vunpack.c.h.b16 %v438
    %v1229 = vunpack.c.l.b16 %v439
    %v1230 = vunpack.c.h.b16 %v439
    %v1231 = vunpack.c.l.b16 %v440
    %v1232 = vunpack.c.h.b16 %v440
    %v1233 = vunpack.c.l.b16 %v441
    %v1234 = vunpack.c.h.b16 %v441
    %v1235 = vunpack.c.l.b16 %v442
    %v1236 = vunpack.c.h.b16 %v442
    %v1237 = vunpack.c.l.b16 %v443
    %v1238 = vunpack.c.h.b16 %v443
    %v1239 = vunpack.c.l.b16 %v444
    %v1240 = vunpack.c.h.b16 %v444
    %v1241 = vunpack.c.l.b16 %v445
    %v1242 = vunpack.c.h.b16 %v445
    %v1243 = vunpack.c.l.b16 %v446
    %v1244 = vunpack.c.h.b16 %v446
    %v1245 = vunpack.c.l.b16 %v447
    %v1246 = vunpack.c.h.b16 %v447
    %v1247 = vunpack.c.l.b16 %v448
    %v1248 = vunpack.c.h.b16 %v448
    %v1249 = vunpack.c.l.b16 %v449
    %v1250 = vunpack.c.h.b16 %v449
    %v1251 = vunpack.c.l.b16 %v450
    %v1252 = vunpack.c.h.b16 %v450
    %v1253 = vunpack.c.l.b16 %v451
    %v1254 = vunpack.c.h.b16 %v451
    %v1255 = vunpack.c.l.b16 %v452
    %v1256 = vunpack.c.h.b16 %v452
    %v1257 = vunpack.c.l.b16 %v453
    %v1258 = vunpack.c.h.b16 %v453
    %v1259 = vunpack.c.l.b16 %v454
    %v1260 = vunpack.c.h.b16 %v454
    %v1261 = vunpack.c.l.b16 %v455
    %v1262 = vunpack.c.h.b16 %v455
    %v1263 = vunpack.c.l.b16 %v456
    %v1264 = vunpack.c.h.b16 %v456
    %v1265 = vunpack.c.l.b16 %v457
    %v1266 = vunpack.c.h.b16 %v457
    %v1267 = vunpack.c.l.b16 %v458
    %v1268 = vunpack.c.h.b16 %v458
    %v1269 = vunpack.c.l.b16 %v459
    %v1270 = vunpack.c.h.b16 %v459
    %v1271 = vunpack.c.l.b16 %v460
    %v1272 = vunpack.c.h.b16 %v460
    %v1273 = vunpack.c.l.b16 %v461
    %v1274 = vunpack.c.h.b16 %v461
    %v1275 = vunpack.c.l.b16 %v462
    %v1276 = vunpack.c.h.b16 %v462
    %v1277 = vunpack.c.l.b16 %v463
    %v1278 = vunpack.c.h.b16 %v463
    %v1279 = vunpack.c.l.b16 %v464
    %v1280 = vunpack.c.h.b16 %v464
    %v1281 = vpack.c.b16 %v739, %v737
    %v1282 = vpack.c.b16 %v740, %v738
    %v1283 = vpack.c.b16 %v743, %v741
    %v1284 = vpack.c.b16 %v744, %v742
    %v1285 = vpack.c.b16 %v747, %v745
    %v1286 = vpack.c.b16 %v748, %v746
    %v1287 = vpack.c.b16 %v751, %v749
    %v1288 = vpack.c.b16 %v752, %v750
    %v1289 = vpack.c.b16 %v755, %v753
    %v1290 = vpack.c.b16 %v756, %v754
    %v1291 = vpack.c.b16 %v759, %v757
    %v1292 = vpack.c.b16 %v760, %v758
    %v1293 = vpack.c.b16 %v763, %v761
    %v1294 = vpack.c.b16 %v764, %v762
    %v1295 = vpack.c.b16 %v767, %v765
    %v1296 = vpack.c.b16 %v768, %v766
    %v1297 = vpack.c.b16 %v771, %v769
    %v1298 = vpack.c.b16 %v772, %v770
    %v1299 = vpack.c.b16 %v775, %v773
    %v1300 = vpack.c.b16 %v776, %v774
    %v1301 = vpack.c.b16 %v779, %v777
    %v1302 = vpack.c.b16 %v780, %v778
    %v1303 = vpack.c.b16 %v783, %v781
    %v1304 = vpack.c.b16 %v784, %v782
    %v1305 = vpack.c.b16 %v787, %v785
    %v1306 = vpack.c.b16 %v788, %v786
    %v1307 = vpack.c.b16 %v791, %v789
    %v1308 = vpack.c.b16 %v792, %v790
    %v1309 = vpack.c.b16 %v795, %v793
    %v1310 = vpack.c.b16 %v796, %v794
    %v1311 = vpack.c.b16 %v799, %v797
    %v1312 = vpack.c.b16 %v800, %v798
    %v1313 = vpack.c.b16 %v803, %v801
    %v1314 = vpack.c.b16 %v804, %v802
    %v1315 = vpack.c.b16 %v807, %v805
    %v1316 = vpack.c.b16 %v808, %v806
    %v1317 = vpack.c.b16 %v811, %v809
    %v1318 = vpack.c.b16 %v812, %v810
    %v1319 = vpack.c.b16 %v815, %v813
    %v1320 = vpack.c.b16 %v816, %v814
    %v1321 = vpack.c.b16 %v819, %v817
    %v1322 = vpack.c.b16 %v820, %v818
    %v1323 = vpack.c.b16 %v823, %v821
    %v1324 = vpack.c.b16 %v824, %v822
    %v1325 = vpack.c.b16 %v827, %v825
    %v1326 = vpack.c.b16 %v828, %v826
    %v1327 = vpack.c.b16 %v831, %v829
    %v1328 = vpack.c.b16 %v832, %v830
    %v1329 = vpack.c.b16 %v835, %v833
    %v1330 = vpack.c.b16 %v836, %v834
    %v1331 = vpack.c.b16 %v839, %v837
    %v1332 = vpack.c.b16 %v840, %v838
    %v1333 = vpack.c.b16 %v843, %v841
    %v1334 = vpack.c.b16 %v844, %v842
    %v1335 = vpack.c.b16 %v847, %v845
    %v1336 = vpack.c.b16 %v848, %v846
    %v1337 = vpack.c.b16 %v851, %v849
    %v1338 = vpack.c.b16 %v852, %v850
    %v1339 = vpack.c.b16 %v855, %v853
    %v1340 = vpack.c.b16 %v856, %v854
    %v1341 = vpack.c.b16 %v859, %v857
    %v1342 = vpack.c.b16 %v860, %v858
    %v1343 = vpack.c.b16 %v863, %v861
    %v1344 = vpack.c.b16 %v864, %v862
    %v1345 = vpack.c.b16 %v867, %v865
    %v1346 = vpack.c.b16 %v868, %v866
    %v1347 = vpack.c.b16 %v871, %v869
    %v1348 = vpack.c.b16 %v872, %v870
    %v1349 = vpack.c.b16 %v875, %v873
    %v1350 = vpack.c.b16 %v876, %v874
    %v1351 = vpack.c.b16 %v879, %v877
    %v1352 = vpack.c.b16 %v880, %v878
    %v1353 = vpack.c.b16 %v883, %v881
    %v1354 = vpack.c.b16 %v884, %v882
    %v1355 = vpack.c.b16 %v887, %v885
    %v1356 = vpack.c.b16 %v888, %v886
    %v1357 = vpack.c.b16 %v891, %v889
    %v1358 = vpack.c.b16 %v892, %v890
    %v1359 = vpack.c.b16 %v895, %v893
    %v1360 = vpack.c.b16 %v896, %v894
    %v1361 = vpack.c.b16 %v899, %v897
    %v1362 = vpack.c.b16 %v900, %v898
    %v1363 = vpack.c.b16 %v903, %v901
    %v1364 = vpack.c.b16 %v904, %v902
    %v1365 = vpack.c.b16 %v907, %v905
    %v1366 = vpack.c.b16 %v908, %v906
    %v1367 = vpack.c.b16 %v911, %v909
    %v1368 = vpack.c.b16 %v912, %v910
    %v1369 = vpack.c.b16 %v915, %v913
    %v1370 = vpack.c.b16 %v916, %v914
    %v1371 = vpack.c.b16 %v919, %v917
    %v1372 = vpack.c.b16 %v920, %v918
    %v1373 = vpack.c.b16 %v923, %v921
    %v1374 = vpack.c.b16 %v924, %v922
    %v1375 = vpack.c.b16 %v927, %v925
    %v1376 = vpack.c.b16 %v928, %v926
    %v1377 = vpack.c.b16 %v931, %v929
    %v1378 = vpack.c.b16 %v932, %v930
    %v1379 = vpack.c.b16 %v935, %v933
    %v1380 = vpack.c.b16 %v936, %v934
    %v1381 = vpack.c.b16 %v939, %v937
    %v1382 = vpack.c.b16 %v940, %v938
    %v1383 = vpack.c.b16 %v943, %v941
    %v1384 = vpack.c.b16 %v944, %v942
    %v1385 = vpack.c.b16 %v947, %v945
    %v1386 = vpack.c.b16 %v948, %v946
    %v1387 = vpack.c.b16 %v951, %v949
    %v1388 = vpack.c.b16 %v952, %v950
    %v1389 = vpack.c.b16 %v955, %v953
    %v1390 = vpack.c.b16 %v956, %v954
    %v1391 = vpack.c.b16 %v959, %v957
    %v1392 = vpack.c.b16 %v960, %v958
    %v1393 = vpack.c.b16 %v963, %v961
    %v1394 = vpack.c.b16 %v964, %v962
    %v1395 = vpack.c.b16 %v967, %v965
    %v1396 = vpack.c.b16 %v968, %v966
    %v1397 = vpack.c.b16 %v971, %v969
    %v1398 = vpack.c.b16 %v972, %v970
    %v1399 = vpack.c.b16 %v975, %v973
    %v1400 = vpack.c.b16 %v976, %v974
    %v1401 = vpack.c.b16 %v979, %v977
    %v1402 = vpack.c.b16 %v980, %v978
    %v1403 = vpack.c.b16 %v983, %v981
    %v1404 = vpack.c.b16 %v984, %v982
    %v1405 = vpack.c.b16 %v987, %v985
    %v1406 = vpack.c.b16 %v988, %v986
    %v1407 = vpack.c.b16 %v991, %v989
    %v1408 = vpack.c.b16 %v992, %v990
    %v1409 = vpack.c.b16 %v995, %v993
    %v1410 = vpack.c.b16 %v996, %v994
    %v1411 = vpack.c.b16 %v999, %v997
    %v1412 = vpack.c.b16 %v1000, %v998
    %v1413 = vpack.c.b16 %v1003, %v1001
    %v1414 = vpack.c.b16 %v1004, %v1002
    %v1415 = vpack.c.b16 %v1007, %v1005
    %v1416 = vpack.c.b16 %v1008, %v1006
    %v1417 = vpack.c.b16 %v1011, %v1009
    %v1418 = vpack.c.b16 %v1012, %v1010
    %v1419 = vpack.c.b16 %v1015, %v1013
    %v1420 = vpack.c.b16 %v1016, %v1014
    %v1421 = vpack.c.b16 %v1019, %v1017
    %v1422 = vpack.c.b16 %v1020, %v1018
    %v1423 = vpack.c.b16 %v1023, %v1021
    %v1424 = vpack.c.b16 %v1024, %v1022
    %v1425 = vpack.c.b16 %v1027, %v1025
    %v1426 = vpack.c.b16 %v1028, %v1026
    %v1427 = vpack.c.b16 %v1031, %v1029
    %v1428 = vpack.c.b16 %v1032, %v1030
    %v1429 = vpack.c.b16 %v1035, %v1033
    %v1430 = vpack.c.b16 %v1036, %v1034
    %v1431 = vpack.c.b16 %v1039, %v1037
    %v1432 = vpack.c.b16 %v1040, %v1038
    %v1433 = vpack.c.b16 %v1043, %v1041
    %v1434 = vpack.c.b16 %v1044, %v1042
    %v1435 = vpack.c.b16 %v1047, %v1045
    %v1436 = vpack.c.b16 %v1048, %v1046
    %v1437 = vpack.c.b16 %v1051, %v1049
    %v1438 = vpack.c.b16 %v1052, %v1050
    %v1439 = vpack.c.b16 %v1055, %v1053
    %v1440 = vpack.c.b16 %v1056, %v1054
    %v1441 = vpack.c.b16 %v1059, %v1057
    %v1442 = vpack.c.b16 %v1060, %v1058
    %v1443 = vpack.c.b16 %v1063, %v1061
    %v1444 = vpack.c.b16 %v1064, %v1062
    %v1445 = vpack.c.b16 %v1067, %v1065
    %v1446 = vpack.c.b16 %v1068, %v1066
    %v1447 = vpack.c.b16 %v1071, %v1069
    %v1448 = vpack.c.b16 %v1072, %v1070
    %v1449 = vpack.c.b16 %v1075, %v1073
    %v1450 = vpack.c.b16 %v1076, %v1074
    %v1451 = vpack.c.b16 %v1079, %v1077
    %v1452 = vpack.c.b16 %v1080, %v1078
    %v1453 = vpack.c.b16 %v1083, %v1081
    %v1454 = vpack.c.b16 %v1084, %v1082
    %v1455 = vpack.c.b16 %v1087, %v1085
    %v1456 = vpack.c.b16 %v1088, %v1086
    %v1457 = vpack.c.b16 %v1091, %v1089
    %v1458 = vpack.c.b16 %v1092, %v1090
    %v1459 = vpack.c.b16 %v1095, %v1093
    %v1460 = vpack.c.b16 %v1096, %v1094
    %v1461 = vpack.c.b16 %v1099, %v1097
    %v1462 = vpack.c.b16 %v1100, %v1098
    %v1463 = vpack.c.b16 %v1103, %v1101
    %v1464 = vpack.c.b16 %v1104, %v1102
    %v1465 = vpack.c.b16 %v1107, %v1105
    %v1466 = vpack.c.b16 %v1108, %v1106
    %v1467 = vpack.c.b16 %v1111, %v1109
    %v1468 = vpack.c.b16 %v1112, %v1110
    %v1469 = vpack.c.b16 %v1115, %v1113
    %v1470 = vpack.c.b16 %v1116, %v1114
    %v1471 = vpack.c.b16 %v1119, %v1117
    %v1472 = vpack.c.b16 %v1120, %v1118
    %v1473 = vpack.c.b16 %v1123, %v1121
    %v1474 = vpack.c.b16 %v1124, %v1122
    %v1475 = vpack.c.b16 %v1127, %v1125
    %v1476 = vpack.c.b16 %v1128, %v1126
    %v1477 = vpack.c.b16 %v1131, %v1129
    %v1478 = vpack.c.b16 %v1132, %v1130
    %v1479 = vpack.c.b16 %v1135, %v1133
    %v1480 = vpack.c.b16 %v1136, %v1134
    %v1481 = vpack.c.b16 %v1139, %v1137
    %v1482 = vpack.c.b16 %v1140, %v1138
    %v1483 = vpack.c.b16 %v1143, %v1141
    %v1484 = vpack.c.b16 %v1144, %v1142
    %v1485 = vpack.c.b16 %v1147, %v1145
    %v1486 = vpack.c.b16 %v1148, %v1146
    %v1487 = vpack.c.b16 %v1151, %v1149
    %v1488 = vpack.c.b16 %v1152, %v1150
    %v1489 = vpack.c.b16 %v1155, %v1153
    %v1490 = vpack.c.b16 %v1156, %v1154
    %v1491 = vpack.c.b16 %v1159, %v1157
    %v1492 = vpack.c.b16 %v1160, %v1158
    %v1493 = vpack.c.b16 %v1163, %v1161
    %v1494 = vpack.c.b16 %v1164, %v1162
    %v1495 = vpack.c.b16 %v1167, %v1165
    %v1496 = vpack.c.b16 %v1168, %v1166
    %v1497 = vpack.c.b16 %v1171, %v1169
    %v1498 = vpack.c.b16 %v1172, %v1170
    %v1499 = vpack.c.b16 %v1175, %v1173
    %v1500 = vpack.c.b16 %v1176, %v1174
    %v1501 = vpack.c.b16 %v1179, %v1177
    %v1502 = vpack.c.b16 %v1180, %v1178
    %v1503 = vpack.c.b16 %v1183, %v1181
    %v1504 = vpack.c.b16 %v1184, %v1182
    %v1505 = vpack.c.b16 %v1187, %v1185
    %v1506 = vpack.c.b16 %v1188, %v1186
    %v1507 = vpack.c.b16 %v1191, %v1189
    %v1508 = vpack.c.b16 %v1192, %v1190
    %v1509 = vpack.c.b16 %v1195, %v1193
    %v1510 = vpack.c.b16 %v1196, %v1194
    %v1511 = vpack.c.b16 %v1199, %v1197
    %v1512 = vpack.c.b16 %v1200, %v1198
    %v1513 = vpack.c.b16 %v1203, %v1201
    %v1514 = vpack.c.b16 %v1204, %v1202
    %v1515 = vpack.c.b16 %v1207, %v1205
    %v1516 = vpack.c.b16 %v1208, %v1206
    %v1517 = vpack.c.b16 %v1211, %v1209
    %v1518 = vpack.c.b16 %v1212, %v1210
    %v1519 = vpack.c.b16 %v1215, %v1213
    %v1520 = vpack.c.b16 %v1216, %v1214
    %v1521 = vpack.c.b16 %v1219, %v1217
    %v1522 = vpack.c.b16 %v1220, %v1218
    %v1523 = vpack.c.b16 %v1223, %v1221
    %v1524 = vpack.c.b16 %v1224, %v1222
    %v1525 = vpack.c.b16 %v1227, %v1225
    %v1526 = vpack.c.b16 %v1228, %v1226
    %v1527 = vpack.c.b16 %v1231, %v1229
    %v1528 = vpack.c.b16 %v1232, %v1230
    %v1529 = vpack.c.b16 %v1235, %v1233
    %v1530 = vpack.c.b16 %v1236, %v1234
    %v1531 = vpack.c.b16 %v1239, %v1237
    %v1532 = vpack.c.b16 %v1240, %v1238
    %v1533 = vpack.c.b16 %v1243, %v1241
    %v1534 = vpack.c.b16 %v1244, %v1242
    %v1535 = vpack.c.b16 %v1247, %v1245
    %v1536 = vpack.c.b16 %v1248, %v1246
    %v1537 = vpack.c.b16 %v1251, %v1249
    %v1538 = vpack.c.b16 %v1252, %v1250
    %v1539 = vpack.c.b16 %v1255, %v1253
    %v1540 = vpack.c.b16 %v1256, %v1254
    %v1541 = vpack.c.b16 %v1259, %v1257
    %v1542 = vpack.c.b16 %v1260, %v1258
    %v1543 = vpack.c.b16 %v1263, %v1261
    %v1544 = vpack.c.b16 %v1264, %v1262
    %v1545 = vpack.c.b16 %v1267, %v1265
    %v1546 = vpack.c.b16 %v1268, %v1266
    %v1547 = vpack.c.b16 %v1271, %v1269
    %v1548 = vpack.c.b16 %v1272, %v1270
    %v1549 = vpack.c.b16 %v1275, %v1273
    %v1550 = vpack.c.b16 %v1276, %v1274
    %v1551 = vpack.c.b16 %v1279, %v1277
    %v1552 = vpack.c.b16 %v1280, %v1278
    %1825 = vmatprep.subr.bf16.mxu0 %v1282
    %1826 = vmatpush1.bf16.msra.mxu0 %v1281
    %1827 = vmatprep.subr.bf16.mxu0 %v1284
    %1828 = vmatpush1.bf16.msra.mxu0 %v1283
    %1829 = vmatprep.subr.bf16.mxu0 %v1286
    %1830 = vmatpush1.bf16.msra.mxu0 %v1285
    %1831 = vmatprep.subr.bf16.mxu0 %v1288
    %1832 = vmatpush1.bf16.msra.mxu0 %v1287
    %1833 = vmatprep.subr.bf16.mxu0 %v1290
    %1834 = vmatpush1.bf16.msra.mxu0 %v1289
    %1835 = vmatprep.subr.bf16.mxu0 %v1292
    %1836 = vmatpush1.bf16.msra.mxu0 %v1291
    %1837 = vmatprep.subr.bf16.mxu0 %v1294
    %1838 = vmatpush1.bf16.msra.mxu0 %v1293
    %1839 = vmatprep.subr.bf16.mxu0 %v1296
    %1840 = vmatpush1.bf16.msra.mxu0 %v1295
    %1841 = vmatprep.subr.bf16.mxu0 %v1298
    %1842 = vmatpush1.bf16.msra.mxu0 %v1297
    %1843 = vmatprep.subr.bf16.mxu0 %v1300
    %1844 = vmatpush1.bf16.msra.mxu0 %v1299
    %1845 = vmatprep.subr.bf16.mxu0 %v1302
    %1846 = vmatpush1.bf16.msra.mxu0 %v1301
    %1847 = vmatprep.subr.bf16.mxu0 %v1304
    %1848 = vmatpush1.bf16.msra.mxu0 %v1303
    %1849 = vmatprep.subr.bf16.mxu0 %v1306
    %1850 = vmatpush1.bf16.msra.mxu0 %v1305
    %1851 = vmatprep.subr.bf16.mxu0 %v1308
    %1852 = vmatpush1.bf16.msra.mxu0 %v1307
    %1853 = vmatprep.subr.bf16.mxu0 %v1310
    %1854 = vmatpush1.bf16.msra.mxu0 %v1309
    %1855 = vmatprep.subr.bf16.mxu0 %v1312
    %1856 = vmatpush1.bf16.msra.mxu0 %v1311
    %1857 = vmatprep.mubr.bf16.mxu0 %v177
    %1858 = vmatmul.mubr.bf16.gmra.mrb[0].mxu0 %v176
    %v1859 = vpop.f32.mrb[0].mxu0
    %v1860 = vadd.f32 0.0, %v1859
    %v1861 = vpop.f32.mrb[0].mxu0
    %v1862 = vadd.f32 0.0, %v1861
    %v1863 = vpop.f32.mrb[0].mxu0
    %v1864 = vpop.f32.mrb[0].mxu0
    %1865 = vdwg.mxu0
    %1866 = vmatprep.subr.bf16.mxu0 %v1314
    %1867 = vmatpush1.bf16.msra.mxu0 %v1313
    %1868 = vmatprep.subr.bf16.mxu0 %v1316
    %1869 = vmatpush1.bf16.msra.mxu0 %v1315
    %1870 = vmatprep.subr.bf16.mxu0 %v1318
    %1871 = vmatpush1.bf16.msra.mxu0 %v1317
    %1872 = vmatprep.subr.bf16.mxu0 %v1320
    %1873 = vmatpush1.bf16.msra.mxu0 %v1319
    %1874 = vmatprep.subr.bf16.mxu0 %v1322
    %1875 = vmatpush1.bf16.msra.mxu0 %v1321
    %1876 = vmatprep.subr.bf16.mxu0 %v1324
    %1877 = vmatpush1.bf16.msra.mxu0 %v1323
    %1878 = vmatprep.subr.bf16.mxu0 %v1326
    %1879 = vmatpush1.bf16.msra.mxu0 %v1325
    %1880 = vmatprep.subr.bf16.mxu0 %v1328
    %1881 = vmatpush1.bf16.msra.mxu0 %v1327
    %1882 = vmatprep.subr.bf16.mxu0 %v1330
    %1883 = vmatpush1.bf16.msra.mxu0 %v1329
    %1884 = vmatprep.subr.bf16.mxu0 %v1332
    %1885 = vmatpush1.bf16.msra.mxu0 %v1331
    %1886 = vmatprep.subr.bf16.mxu0 %v1334
    %1887 = vmatpush1.bf16.msra.mxu0 %v1333
    %1888 = vmatprep.subr.bf16.mxu0 %v1336
    %1889 = vmatpush1.bf16.msra.mxu0 %v1335
    %1890 = vmatprep.subr.bf16.mxu0 %v1338
    %1891 = vmatpush1.bf16.msra.mxu0 %v1337
    %1892 = vmatprep.subr.bf16.mxu0 %v1340
    %1893 = vmatpush1.bf16.msra.mxu0 %v1339
    %1894 = vmatprep.subr.bf16.mxu0 %v1342
    %1895 = vmatpush1.bf16.msra.mxu0 %v1341
    %1896 = vmatprep.subr.bf16.mxu0 %v1344
    %1897 = vmatpush1.bf16.msra.mxu0 %v1343
    %1898 = vmatprep.mubr.bf16.mxu0 %v179
    %1899 = vmatmul.mubr.bf16.gmra.mrb[0].mxu0 %v178
    %v1900 = vpop.f32.mrb[0].mxu0
    %v1901 = vadd.f32 %v1860, %v1900
    %v1902 = vpop.f32.mrb[0].mxu0
    %v1903 = vadd.f32 %v1862, %v1902
    %v1904 = vpop.f32.mrb[0].mxu0
    %v1905 = vpop.f32.mrb[0].mxu0
    %1906 = vdwg.mxu0
    %1907 = vmatprep.subr.bf16.mxu0 %v1346
    %1908 = vmatpush1.bf16.msra.mxu0 %v1345
    %1909 = vmatprep.subr.bf16.mxu0 %v1348
    %1910 = vmatpush1.bf16.msra.mxu0 %v1347
    %1911 = vmatprep.subr.bf16.mxu0 %v1350
    %1912 = vmatpush1.bf16.msra.mxu0 %v1349
    %1913 = vmatprep.subr.bf16.mxu0 %v1352
    %1914 = vmatpush1.bf16.msra.mxu0 %v1351
    %1915 = vmatprep.subr.bf16.mxu0 %v1354
    %1916 = vmatpush1.bf16.msra.mxu0 %v1353
    %1917 = vmatprep.subr.bf16.mxu0 %v1356
    %1918 = vmatpush1.bf16.msra.mxu0 %v1355
    %1919 = vmatprep.subr.bf16.mxu0 %v1358
    %1920 = vmatpush1.bf16.msra.mxu0 %v1357
    %1921 = vmatprep.subr.bf16.mxu0 %v1360
    %1922 = vmatpush1.bf16.msra.mxu0 %v1359
    %1923 = vmatprep.subr.bf16.mxu0 %v1362
    %1924 = vmatpush1.bf16.msra.mxu0 %v1361
    %1925 = vmatprep.subr.bf16.mxu0 %v1364
    %1926 = vmatpush1.bf16.msra.mxu0 %v1363
    %1927 = vmatprep.subr.bf16.mxu0 %v1366
    %1928 = vmatpush1.bf16.msra.mxu0 %v1365
    %1929 = vmatprep.subr.bf16.mxu0 %v1368
    %1930 = vmatpush1.bf16.msra.mxu0 %v1367
    %1931 = vmatprep.subr.bf16.mxu0 %v1370
    %1932 = vmatpush1.bf16.msra.mxu0 %v1369
    %1933 = vmatprep.subr.bf16.mxu0 %v1372
    %1934 = vmatpush1.bf16.msra.mxu0 %v1371
    %1935 = vmatprep.subr.bf16.mxu0 %v1374
    %1936 = vmatpush1.bf16.msra.mxu0 %v1373
    %1937 = vmatprep.subr.bf16.mxu0 %v1376
    %1938 = vmatpush1.bf16.msra.mxu0 %v1375
    %1939 = vmatprep.mubr.bf16.mxu0 %v181
    %1940 = vmatmul.mubr.bf16.gmra.mrb[0].mxu0 %v180
    %v1941 = vpop.f32.mrb[0].mxu0
    %v1942 = vadd.f32 %v1901, %v1941
    %v1943 = vpop.f32.mrb[0].mxu0
    %v1944 = vadd.f32 %v1903, %v1943
    %v1945 = vpop.f32.mrb[0].mxu0
    %v1946 = vpop.f32.mrb[0].mxu0
    %1947 = vdwg.mxu0
    %1948 = vmatprep.subr.bf16.mxu0 %v1378
    %1949 = vmatpush1.bf16.msra.mxu0 %v1377
    %1950 = vmatprep.subr.bf16.mxu0 %v1380
    %1951 = vmatpush1.bf16.msra.mxu0 %v1379
    %1952 = vmatprep.subr.bf16.mxu0 %v1382
    %1953 = vmatpush1.bf16.msra.mxu0 %v1381
    %1954 = vmatprep.subr.bf16.mxu0 %v1384
    %1955 = vmatpush1.bf16.msra.mxu0 %v1383
    %1956 = vmatprep.subr.bf16.mxu0 %v1386
    %1957 = vmatpush1.bf16.msra.mxu0 %v1385
    %1958 = vmatprep.subr.bf16.mxu0 %v1388
    %1959 = vmatpush1.bf16.msra.mxu0 %v1387
    %1960 = vmatprep.subr.bf16.mxu0 %v1390
    %1961 = vmatpush1.bf16.msra.mxu0 %v1389
    %1962 = vmatprep.subr.bf16.mxu0 %v1392
    %1963 = vmatpush1.bf16.msra.mxu0 %v1391
    %1964 = vmatprep.subr.bf16.mxu0 %v1394
    %1965 = vmatpush1.bf16.msra.mxu0 %v1393
    %1966 = vmatprep.subr.bf16.mxu0 %v1396
    %1967 = vmatpush1.bf16.msra.mxu0 %v1395
    %1968 = vmatprep.subr.bf16.mxu0 %v1398
    %1969 = vmatpush1.bf16.msra.mxu0 %v1397
    %1970 = vmatprep.subr.bf16.mxu0 %v1400
    %1971 = vmatpush1.bf16.msra.mxu0 %v1399
    %1972 = vmatprep.subr.bf16.mxu0 %v1402
    %1973 = vmatpush1.bf16.msra.mxu0 %v1401
    %1974 = vmatprep.subr.bf16.mxu0 %v1404
    %1975 = vmatpush1.bf16.msra.mxu0 %v1403
    %1976 = vmatprep.subr.bf16.mxu0 %v1406
    %1977 = vmatpush1.bf16.msra.mxu0 %v1405
    %1978 = vmatprep.subr.bf16.mxu0 %v1408
    %1979 = vmatpush1.bf16.msra.mxu0 %v1407
    %1980 = vmatprep.mubr.bf16.mxu0 %v183
    %1981 = vmatmul.mubr.bf16.gmra.mrb[0].mxu0 %v182
    %v1982 = vpop.f32.mrb[0].mxu0
    %v1983 = vadd.f32 %v1942, %v1982
    %v1984 = vpop.f32.mrb[0].mxu0
    %v1985 = vadd.f32 %v1944, %v1984
    %v1986 = vpop.f32.mrb[0].mxu0
    %v1987 = vpop.f32.mrb[0].mxu0
    %1988 = vdwg.mxu0
    %1989 = vmatprep.subr.bf16.mxu0 %v1410
    %1990 = vmatpush1.bf16.msra.mxu0 %v1409
    %1991 = vmatprep.subr.bf16.mxu0 %v1412
    %1992 = vmatpush1.bf16.msra.mxu0 %v1411
    %1993 = vmatprep.subr.bf16.mxu0 %v1414
    %1994 = vmatpush1.bf16.msra.mxu0 %v1413
    %1995 = vmatprep.subr.bf16.mxu0 %v1416
    %1996 = vmatpush1.bf16.msra.mxu0 %v1415
    %1997 = vmatprep.subr.bf16.mxu0 %v1418
    %1998 = vmatpush1.bf16.msra.mxu0 %v1417
    %1999 = vmatprep.subr.bf16.mxu0 %v1420
    %2000 = vmatpush1.bf16.msra.mxu0 %v1419
    %2001 = vmatprep.subr.bf16.mxu0 %v1422
    %2002 = vmatpush1.bf16.msra.mxu0 %v1421
    %2003 = vmatprep.subr.bf16.mxu0 %v1424
    %2004 = vmatpush1.bf16.msra.mxu0 %v1423
    %2005 = vmatprep.subr.bf16.mxu0 %v1426
    %2006 = vmatpush1.bf16.msra.mxu0 %v1425
    %2007 = vmatprep.subr.bf16.mxu0 %v1428
    %2008 = vmatpush1.bf16.msra.mxu0 %v1427
    %2009 = vmatprep.subr.bf16.mxu0 %v1430
    %2010 = vmatpush1.bf16.msra.mxu0 %v1429
    %2011 = vmatprep.subr.bf16.mxu0 %v1432
    %2012 = vmatpush1.bf16.msra.mxu0 %v1431
    %2013 = vmatprep.subr.bf16.mxu0 %v1434
    %2014 = vmatpush1.bf16.msra.mxu0 %v1433
    %2015 = vmatprep.subr.bf16.mxu0 %v1436
    %2016 = vmatpush1.bf16.msra.mxu0 %v1435
    %2017 = vmatprep.subr.bf16.mxu0 %v1438
    %2018 = vmatpush1.bf16.msra.mxu0 %v1437
    %2019 = vmatprep.subr.bf16.mxu0 %v1440
    %2020 = vmatpush1.bf16.msra.mxu0 %v1439
    %2021 = vmatprep.mubr.bf16.mxu0 %v185
    %2022 = vmatmul.mubr.bf16.gmra.mrb[0].mxu0 %v184
    %v2023 = vpop.f32.mrb[0].mxu0
    %v2024 = vadd.f32 %v1983, %v2023
    %v2025 = vpop.f32.mrb[0].mxu0
    %v2026 = vadd.f32 %v1985, %v2025
    %v2027 = vpop.f32.mrb[0].mxu0
    %v2028 = vpop.f32.mrb[0].mxu0
    %2029 = vdwg.mxu0
    %2030 = vmatprep.subr.bf16.mxu0 %v1442
    %2031 = vmatpush1.bf16.msra.mxu0 %v1441
    %2032 = vmatprep.subr.bf16.mxu0 %v1444
    %2033 = vmatpush1.bf16.msra.mxu0 %v1443
    %2034 = vmatprep.subr.bf16.mxu0 %v1446
    %2035 = vmatpush1.bf16.msra.mxu0 %v1445
    %2036 = vmatprep.subr.bf16.mxu0 %v1448
    %2037 = vmatpush1.bf16.msra.mxu0 %v1447
    %2038 = vmatprep.subr.bf16.mxu0 %v1450
    %2039 = vmatpush1.bf16.msra.mxu0 %v1449
    %2040 = vmatprep.subr.bf16.mxu0 %v1452
    %2041 = vmatpush1.bf16.msra.mxu0 %v1451
    %2042 = vmatprep.subr.bf16.mxu0 %v1454
    %2043 = vmatpush1.bf16.msra.mxu0 %v1453
    %2044 = vmatprep.subr.bf16.mxu0 %v1456
    %2045 = vmatpush1.bf16.msra.mxu0 %v1455
    %2046 = vmatprep.subr.bf16.mxu0 %v1458
    %2047 = vmatpush1.bf16.msra.mxu0 %v1457
    %2048 = vmatprep.subr.bf16.mxu0 %v1460
    %2049 = vmatpush1.bf16.msra.mxu0 %v1459
    %2050 = vmatprep.subr.bf16.mxu0 %v1462
    %2051 = vmatpush1.bf16.msra.mxu0 %v1461
    %2052 = vmatprep.subr.bf16.mxu0 %v1464
    %2053 = vmatpush1.bf16.msra.mxu0 %v1463
    %2054 = vmatprep.subr.bf16.mxu0 %v1466
    %2055 = vmatpush1.bf16.msra.mxu0 %v1465
    %2056 = vmatprep.subr.bf16.mxu0 %v1468
    %2057 = vmatpush1.bf16.msra.mxu0 %v1467
    %2058 = vmatprep.subr.bf16.mxu0 %v1470
    %2059 = vmatpush1.bf16.msra.mxu0 %v1469
    %2060 = vmatprep.subr.bf16.mxu0 %v1472
    %2061 = vmatpush1.bf16.msra.mxu0 %v1471
    %2062 = vmatprep.mubr.bf16.mxu0 %v187
    %2063 = vmatmul.mubr.bf16.gmra.mrb[0].mxu0 %v186
    %v2064 = vpop.f32.mrb[0].mxu0
    %v2065 = vadd.f32 %v2024, %v2064
    %v2066 = vpop.f32.mrb[0].mxu0
    %v2067 = vadd.f32 %v2026, %v2066
    %v2068 = vpop.f32.mrb[0].mxu0
    %v2069 = vpop.f32.mrb[0].mxu0
    %2070 = vdwg.mxu0
    %2071 = vmatprep.subr.bf16.mxu0 %v1474
    %2072 = vmatpush1.bf16.msra.mxu0 %v1473
    %2073 = vmatprep.subr.bf16.mxu0 %v1476
    %2074 = vmatpush1.bf16.msra.mxu0 %v1475
    %2075 = vmatprep.subr.bf16.mxu0 %v1478
    %2076 = vmatpush1.bf16.msra.mxu0 %v1477
    %2077 = vmatprep.subr.bf16.mxu0 %v1480
    %2078 = vmatpush1.bf16.msra.mxu0 %v1479
    %2079 = vmatprep.subr.bf16.mxu0 %v1482
    %2080 = vmatpush1.bf16.msra.mxu0 %v1481
    %2081 = vmatprep.subr.bf16.mxu0 %v1484
    %2082 = vmatpush1.bf16.msra.mxu0 %v1483
    %2083 = vmatprep.subr.bf16.mxu0 %v1486
    %2084 = vmatpush1.bf16.msra.mxu0 %v1485
    %2085 = vmatprep.subr.bf16.mxu0 %v1488
    %2086 = vmatpush1.bf16.msra.mxu0 %v1487
    %2087 = vmatprep.subr.bf16.mxu0 %v1490
    %2088 = vmatpush1.bf16.msra.mxu0 %v1489
    %2089 = vmatprep.subr.bf16.mxu0 %v1492
    %2090 = vmatpush1.bf16.msra.mxu0 %v1491
    %2091 = vmatprep.subr.bf16.mxu0 %v1494
    %2092 = vmatpush1.bf16.msra.mxu0 %v1493
    %2093 = vmatprep.subr.bf16.mxu0 %v1496
    %2094 = vmatpush1.bf16.msra.mxu0 %v1495
    %2095 = vmatprep.subr.bf16.mxu0 %v1498
    %2096 = vmatpush1.bf16.msra.mxu0 %v1497
    %2097 = vmatprep.subr.bf16.mxu0 %v1500
    %2098 = vmatpush1.bf16.msra.mxu0 %v1499
    %2099 = vmatprep.subr.bf16.mxu0 %v1502
    %2100 = vmatpush1.bf16.msra.mxu0 %v1501
    %2101 = vmatprep.subr.bf16.mxu0 %v1504
    %2102 = vmatpush1.bf16.msra.mxu0 %v1503
    %2103 = vmatprep.mubr.bf16.mxu0 %v189
    %2104 = vmatmul.mubr.bf16.gmra.mrb[0].mxu0 %v188
    %v2105 = vpop.f32.mrb[0].mxu0
    %v2106 = vadd.f32 %v2065, %v2105
    %v2107 = vpop.f32.mrb[0].mxu0
    %v2108 = vadd.f32 %v2067, %v2107
    %v2109 = vpop.f32.mrb[0].mxu0
    %v2110 = vpop.f32.mrb[0].mxu0
    %2111 = vdwg.mxu0
    %2112 = vmatprep.subr.bf16.mxu0 %v1506
    %2113 = vmatpush1.bf16.msra.mxu0 %v1505
    %2114 = vmatprep.subr.bf16.mxu0 %v1508
    %2115 = vmatpush1.bf16.msra.mxu0 %v1507
    %2116 = vmatprep.subr.bf16.mxu0 %v1510
    %2117 = vmatpush1.bf16.msra.mxu0 %v1509
    %2118 = vmatprep.subr.bf16.mxu0 %v1512
    %2119 = vmatpush1.bf16.msra.mxu0 %v1511
    %2120 = vmatprep.subr.bf16.mxu0 %v1514
    %2121 = vmatpush1.bf16.msra.mxu0 %v1513
    %2122 = vmatprep.subr.bf16.mxu0 %v1516
    %2123 = vmatpush1.bf16.msra.mxu0 %v1515
    %2124 = vmatprep.subr.bf16.mxu0 %v1518
    %2125 = vmatpush1.bf16.msra.mxu0 %v1517
    %2126 = vmatprep.subr.bf16.mxu0 %v1520
    %2127 = vmatpush1.bf16.msra.mxu0 %v1519
    %2128 = vmatprep.subr.bf16.mxu0 %v1522
    %2129 = vmatpush1.bf16.msra.mxu0 %v1521
    %2130 = vmatprep.subr.bf16.mxu0 %v1524
    %2131 = vmatpush1.bf16.msra.mxu0 %v1523
    %2132 = vmatprep.subr.bf16.mxu0 %v1526
    %2133 = vmatpush1.bf16.msra.mxu0 %v1525
    %2134 = vmatprep.subr.bf16.mxu0 %v1528
    %2135 = vmatpush1.bf16.msra.mxu0 %v1527
    %2136 = vmatprep.subr.bf16.mxu0 %v1530
    %2137 = vmatpush1.bf16.msra.mxu0 %v1529
    %2138 = vmatprep.subr.bf16.mxu0 %v1532
    %2139 = vmatpush1.bf16.msra.mxu0 %v1531
    %2140 = vmatprep.subr.bf16.mxu0 %v1534
    %2141 = vmatpush1.bf16.msra.mxu0 %v1533
    %2142 = vmatprep.subr.bf16.mxu0 %v1536
    %2143 = vmatpush1.bf16.msra.mxu0 %v1535
    %2144 = vmatprep.mubr.bf16.mxu0 %v191
    %2145 = vmatmul.mubr.bf16.gmra.mrb[0].mxu0 %v190
    %v2146 = vpop.f32.mrb[0].mxu0
    %v2147 = vadd.f32 %v2106, %v2146
    %v2148 = vpop.f32.mrb[0].mxu0
    %v2149 = vadd.f32 %v2108, %v2148
    %v2150 = vpop.f32.mrb[0].mxu0
    %v2151 = vpop.f32.mrb[0].mxu0
    %2152 = vdwg.mxu0
    %2153 = vmatprep.subr.bf16.mxu0 %v1538
    %2154 = vmatpush1.bf16.msra.mxu0 %v1537
    %2155 = vmatprep.subr.bf16.mxu0 %v1540
    %2156 = vmatpush1.bf16.msra.mxu0 %v1539
    %2157 = vmatprep.subr.bf16.mxu0 %v1542
    %2158 = vmatpush1.bf16.msra.mxu0 %v1541
    %2159 = vmatprep.subr.bf16.mxu0 %v1544
    %2160 = vmatpush1.bf16.msra.mxu0 %v1543
    %2161 = vmatprep.subr.bf16.mxu0 %v1546
    %2162 = vmatpush1.bf16.msra.mxu0 %v1545
    %2163 = vmatprep.subr.bf16.mxu0 %v1548
    %2164 = vmatpush1.bf16.msra.mxu0 %v1547
    %2165 = vmatprep.subr.bf16.mxu0 %v1550
    %2166 = vmatpush1.bf16.msra.mxu0 %v1549
    %2167 = vmatprep.subr.bf16.mxu0 %v1552
    %2168 = vmatpush1.bf16.msra.mxu0 %v1551
    %2169 = vmatprep.subr.bf16.mxu0 0
    %2170 = vmatpush1.bf16.msra.mxu0 0
    %2171 = vmatprep.subr.bf16.mxu0 0
    %2172 = vmatpush1.bf16.msra.mxu0 0
    %2173 = vmatprep.subr.bf16.mxu0 0
    %2174 = vmatpush1.bf16.msra.mxu0 0
    %2175 = vmatprep.subr.bf16.mxu0 0
    %2176 = vmatpush1.bf16.msra.mxu0 0
    %2177 = vmatprep.subr.bf16.mxu0 0
    %2178 = vmatpush1.bf16.msra.mxu0 0
    %2179 = vmatprep.subr.bf16.mxu0 0
    %2180 = vmatpush1.bf16.msra.mxu0 0
    %2181 = vmatprep.subr.bf16.mxu0 0
    %2182 = vmatpush1.bf16.msra.mxu0 0
    %2183 = vmatprep.subr.bf16.mxu0 0
    %2184 = vmatpush1.bf16.msra.mxu0 0
    %2185 = vmatprep.mubr.bf16.mxu0 0
    %2186 = vmatmul.mubr.bf16.gmra.mrb[0].mxu0 %v192
    %v2187 = vpop.f32.mrb[0].mxu0
    %v2188 = vadd.f32 %v2147, %v2187
    %v2189 = vpop.f32.mrb[0].mxu0
    %v2190 = vadd.f32 %v2149, %v2189
    %v2191 = vpop.f32.mrb[0].mxu0
    %v2192 = vpop.f32.mrb[0].mxu0
    %2193 = vdwg.mxu0
    %2194 = vmatprep.subr.bf16.mxu0 %v1282
    %2195 = vmatpush1.bf16.msra.mxu0 %v1281
    %2196 = vmatprep.subr.bf16.mxu0 %v1284
    %2197 = vmatpush1.bf16.msra.mxu0 %v1283
    %2198 = vmatprep.subr.bf16.mxu0 %v1286
    %2199 = vmatpush1.bf16.msra.mxu0 %v1285
    %2200 = vmatprep.subr.bf16.mxu0 %v1288
    %2201 = vmatpush1.bf16.msra.mxu0 %v1287
    %2202 = vmatprep.subr.bf16.mxu0 %v1290
    %2203 = vmatpush1.bf16.msra.mxu0 %v1289
    %2204 = vmatprep.subr.bf16.mxu0 %v1292
    %2205 = vmatpush1.bf16.msra.mxu0 %v1291
    %2206 = vmatprep.subr.bf16.mxu0 %v1294
    %2207 = vmatpush1.bf16.msra.mxu0 %v1293
    %2208 = vmatprep.subr.bf16.mxu0 %v1296
    %2209 = vmatpush1.bf16.msra.mxu0 %v1295
    %2210 = vmatprep.subr.bf16.mxu0 %v1298
    %2211 = vmatpush1.bf16.msra.mxu0 %v1297
    %2212 = vmatprep.subr.bf16.mxu0 %v1300
    %2213 = vmatpush1.bf16.msra.mxu0 %v1299
    %2214 = vmatprep.subr.bf16.mxu0 %v1302
    %2215 = vmatpush1.bf16.msra.mxu0 %v1301
    %2216 = vmatprep.subr.bf16.mxu0 %v1304
    %2217 = vmatpush1.bf16.msra.mxu0 %v1303
    %2218 = vmatprep.subr.bf16.mxu0 %v1306
    %2219 = vmatpush1.bf16.msra.mxu0 %v1305
    %2220 = vmatprep.subr.bf16.mxu0 %v1308
    %2221 = vmatpush1.bf16.msra.mxu0 %v1307
    %2222 = vmatprep.subr.bf16.mxu0 %v1310
    %2223 = vmatpush1.bf16.msra.mxu0 %v1309
    %2224 = vmatprep.subr.bf16.mxu0 %v1312
    %2225 = vmatpush1.bf16.msra.mxu0 %v1311
    %2226 = vmatprep.mubr.bf16.mxu0 %v126
    %2227 = vmatmul.mubr.bf16.gmra.mrb[0].mxu0 %v125
    %v2228 = vpop.f32.mrb[0].mxu0
    %v2229 = vadd.f32 %v2188, %v2228
    %v2230 = vpop.f32.mrb[0].mxu0
    %v2231 = vadd.f32 %v2190, %v2230
    %v2232 = vpop.f32.mrb[0].mxu0
    %v2233 = vpop.f32.mrb[0].mxu0
    %2234 = vdwg.mxu0
    %2235 = vmatprep.subr.bf16.mxu0 %v1314
    %2236 = vmatpush1.bf16.msra.mxu0 %v1313
    %2237 = vmatprep.subr.bf16.mxu0 %v1316
    %2238 = vmatpush1.bf16.msra.mxu0 %v1315
    %2239 = vmatprep.subr.bf16.mxu0 %v1318
    %2240 = vmatpush1.bf16.msra.mxu0 %v1317
    %2241 = vmatprep.subr.bf16.mxu0 %v1320
    %2242 = vmatpush1.bf16.msra.mxu0 %v1319
    %2243 = vmatprep.subr.bf16.mxu0 %v1322
    %2244 = vmatpush1.bf16.msra.mxu0 %v1321
    %2245 = vmatprep.subr.bf16.mxu0 %v1324
    %2246 = vmatpush1.bf16.msra.mxu0 %v1323
    %2247 = vmatprep.subr.bf16.mxu0 %v1326
    %2248 = vmatpush1.bf16.msra.mxu0 %v1325
    %2249 = vmatprep.subr.bf16.mxu0 %v1328
    %2250 = vmatpush1.bf16.msra.mxu0 %v1327
    %2251 = vmatprep.subr.bf16.mxu0 %v1330
    %2252 = vmatpush1.bf16.msra.mxu0 %v1329
    %2253 = vmatprep.subr.bf16.mxu0 %v1332
    %2254 = vmatpush1.bf16.msra.mxu0 %v1331
    %2255 = vmatprep.subr.bf16.mxu0 %v1334
    %2256 = vmatpush1.bf16.msra.mxu0 %v1333
    %2257 = vmatprep.subr.bf16.mxu0 %v1336
    %2258 = vmatpush1.bf16.msra.mxu0 %v1335
    %2259 = vmatprep.subr.bf16.mxu0 %v1338
    %2260 = vmatpush1.bf16.msra.mxu0 %v1337
    %2261 = vmatprep.subr.bf16.mxu0 %v1340
    %2262 = vmatpush1.bf16.msra.mxu0 %v1339
    %2263 = vmatprep.subr.bf16.mxu0 %v1342
    %2264 = vmatpush1.bf16.msra.mxu0 %v1341
    %2265 = vmatprep.subr.bf16.mxu0 %v1344
    %2266 = vmatpush1.bf16.msra.mxu0 %v1343
    %2267 = vmatprep.mubr.bf16.mxu0 %v128
    %2268 = vmatmul.mubr.bf16.gmra.mrb[0].mxu0 %v127
    %v2269 = vpop.f32.mrb[0].mxu0
    %v2270 = vadd.f32 %v2229, %v2269
    %v2271 = vpop.f32.mrb[0].mxu0
    %v2272 = vadd.f32 %v2231, %v2271
    %v2273 = vpop.f32.mrb[0].mxu0
    %v2274 = vpop.f32.mrb[0].mxu0
    %2275 = vdwg.mxu0
    %2276 = vmatprep.subr.bf16.mxu0 %v1346
    %2277 = vmatpush1.bf16.msra.mxu0 %v1345
    %2278 = vmatprep.subr.bf16.mxu0 %v1348
    %2279 = vmatpush1.bf16.msra.mxu0 %v1347
    %2280 = vmatprep.subr.bf16.mxu0 %v1350
    %2281 = vmatpush1.bf16.msra.mxu0 %v1349
    %2282 = vmatprep.subr.bf16.mxu0 %v1352
    %2283 = vmatpush1.bf16.msra.mxu0 %v1351
    %2284 = vmatprep.subr.bf16.mxu0 %v1354
    %2285 = vmatpush1.bf16.msra.mxu0 %v1353
    %2286 = vmatprep.subr.bf16.mxu0 %v1356
    %2287 = vmatpush1.bf16.msra.mxu0 %v1355
    %2288 = vmatprep.subr.bf16.mxu0 %v1358
    %2289 = vmatpush1.bf16.msra.mxu0 %v1357
    %2290 = vmatprep.subr.bf16.mxu0 %v1360
    %2291 = vmatpush1.bf16.msra.mxu0 %v1359
    %2292 = vmatprep.subr.bf16.mxu0 %v1362
    %2293 = vmatpush1.bf16.msra.mxu0 %v1361
    %2294 = vmatprep.subr.bf16.mxu0 %v1364
    %2295 = vmatpush1.bf16.msra.mxu0 %v1363
    %2296 = vmatprep.subr.bf16.mxu0 %v1366
    %2297 = vmatpush1.bf16.msra.mxu0 %v1365
    %2298 = vmatprep.subr.bf16.mxu0 %v1368
    %2299 = vmatpush1.bf16.msra.mxu0 %v1367
    %2300 = vmatprep.subr.bf16.mxu0 %v1370
    %2301 = vmatpush1.bf16.msra.mxu0 %v1369
    %2302 = vmatprep.subr.bf16.mxu0 %v1372
    %2303 = vmatpush1.bf16.msra.mxu0 %v1371
    %2304 = vmatprep.subr.bf16.mxu0 %v1374
    %2305 = vmatpush1.bf16.msra.mxu0 %v1373
    %2306 = vmatprep.subr.bf16.mxu0 %v1376
    %2307 = vmatpush1.bf16.msra.mxu0 %v1375
    %2308 = vmatprep.mubr.bf16.mxu0 %v130
    %2309 = vmatmul.mubr.bf16.gmra.mrb[0].mxu0 %v129
    %v2310 = vpop.f32.mrb[0].mxu0
    %v2311 = vadd.f32 %v2270, %v2310
    %v2312 = vpop.f32.mrb[0].mxu0
    %v2313 = vadd.f32 %v2272, %v2312
    %v2314 = vpop.f32.mrb[0].mxu0
    %v2315 = vpop.f32.mrb[0].mxu0
    %2316 = vdwg.mxu0
    %2317 = vmatprep.subr.bf16.mxu0 %v1378
    %2318 = vmatpush1.bf16.msra.mxu0 %v1377
    %2319 = vmatprep.subr.bf16.mxu0 %v1380
    %2320 = vmatpush1.bf16.msra.mxu0 %v1379
    %2321 = vmatprep.subr.bf16.mxu0 %v1382
    %2322 = vmatpush1.bf16.msra.mxu0 %v1381
    %2323 = vmatprep.subr.bf16.mxu0 %v1384
    %2324 = vmatpush1.bf16.msra.mxu0 %v1383
    %2325 = vmatprep.subr.bf16.mxu0 %v1386
    %2326 = vmatpush1.bf16.msra.mxu0 %v1385
    %2327 = vmatprep.subr.bf16.mxu0 %v1388
    %2328 = vmatpush1.bf16.msra.mxu0 %v1387
    %2329 = vmatprep.subr.bf16.mxu0 %v1390
    %2330 = vmatpush1.bf16.msra.mxu0 %v1389
    %2331 = vmatprep.subr.bf16.mxu0 %v1392
    %2332 = vmatpush1.bf16.msra.mxu0 %v1391
    %2333 = vmatprep.subr.bf16.mxu0 %v1394
    %2334 = vmatpush1.bf16.msra.mxu0 %v1393
    %2335 = vmatprep.subr.bf16.mxu0 %v1396
    %2336 = vmatpush1.bf16.msra.mxu0 %v1395
    %2337 = vmatprep.subr.bf16.mxu0 %v1398
    %2338 = vmatpush1.bf16.msra.mxu0 %v1397
    %2339 = vmatprep.subr.bf16.mxu0 %v1400
    %2340 = vmatpush1.bf16.msra.mxu0 %v1399
    %2341 = vmatprep.subr.bf16.mxu0 %v1402
    %2342 = vmatpush1.bf16.msra.mxu0 %v1401
    %2343 = vmatprep.subr.bf16.mxu0 %v1404
    %2344 = vmatpush1.bf16.msra.mxu0 %v1403
    %2345 = vmatprep.subr.bf16.mxu0 %v1406
    %2346 = vmatpush1.bf16.msra.mxu0 %v1405
    %2347 = vmatprep.subr.bf16.mxu0 %v1408
    %2348 = vmatpush1.bf16.msra.mxu0 %v1407
    %2349 = vmatprep.mubr.bf16.mxu0 %v132
    %2350 = vmatmul.mubr.bf16.gmra.mrb[0].mxu0 %v131
    %v2351 = vpop.f32.mrb[0].mxu0
    %v2352 = vadd.f32 %v2311, %v2351
    %v2353 = vpop.f32.mrb[0].mxu0
    %v2354 = vadd.f32 %v2313, %v2353
    %v2355 = vpop.f32.mrb[0].mxu0
    %v2356 = vpop.f32.mrb[0].mxu0
    %2357 = vdwg.mxu0
    %2358 = vmatprep.subr.bf16.mxu0 %v1410
    %2359 = vmatpush1.bf16.msra.mxu0 %v1409
    %2360 = vmatprep.subr.bf16.mxu0 %v1412
    %2361 = vmatpush1.bf16.msra.mxu0 %v1411
    %2362 = vmatprep.subr.bf16.mxu0 %v1414
    %2363 = vmatpush1.bf16.msra.mxu0 %v1413
    %2364 = vmatprep.subr.bf16.mxu0 %v1416
    %2365 = vmatpush1.bf16.msra.mxu0 %v1415
    %2366 = vmatprep.subr.bf16.mxu0 %v1418
    %2367 = vmatpush1.bf16.msra.mxu0 %v1417
    %2368 = vmatprep.subr.bf16.mxu0 %v1420
    %2369 = vmatpush1.bf16.msra.mxu0 %v1419
    %2370 = vmatprep.subr.bf16.mxu0 %v1422
    %2371 = vmatpush1.bf16.msra.mxu0 %v1421
    %2372 = vmatprep.subr.bf16.mxu0 %v1424
    %2373 = vmatpush1.bf16.msra.mxu0 %v1423
    %2374 = vmatprep.subr.bf16.mxu0 %v1426
    %2375 = vmatpush1.bf16.msra.mxu0 %v1425
    %2376 = vmatprep.subr.bf16.mxu0 %v1428
    %2377 = vmatpush1.bf16.msra.mxu0 %v1427
    %2378 = vmatprep.subr.bf16.mxu0 %v1430
    %2379 = vmatpush1.bf16.msra.mxu0 %v1429
    %2380 = vmatprep.subr.bf16.mxu0 %v1432
    %2381 = vmatpush1.bf16.msra.mxu0 %v1431
    %2382 = vmatprep.subr.bf16.mxu0 %v1434
    %2383 = vmatpush1.bf16.msra.mxu0 %v1433
    %2384 = vmatprep.subr.bf16.mxu0 %v1436
    %2385 = vmatpush1.bf16.msra.mxu0 %v1435
    %2386 = vmatprep.subr.bf16.mxu0 %v1438
    %2387 = vmatpush1.bf16.msra.mxu0 %v1437
    %2388 = vmatprep.subr.bf16.mxu0 %v1440
    %2389 = vmatpush1.bf16.msra.mxu0 %v1439
    %2390 = vmatprep.mubr.bf16.mxu0 %v134
    %2391 = vmatmul.mubr.bf16.gmra.mrb[0].mxu0 %v133
    %v2392 = vpop.f32.mrb[0].mxu0
    %v2393 = vadd.f32 %v2352, %v2392
    %v2394 = vpop.f32.mrb[0].mxu0
    %v2395 = vadd.f32 %v2354, %v2394
    %v2396 = vpop.f32.mrb[0].mxu0
    %v2397 = vpop.f32.mrb[0].mxu0
    %2398 = vdwg.mxu0
    %2399 = vmatprep.subr.bf16.mxu0 %v1442
    %2400 = vmatpush1.bf16.msra.mxu0 %v1441
    %2401 = vmatprep.subr.bf16.mxu0 %v1444
    %2402 = vmatpush1.bf16.msra.mxu0 %v1443
    %2403 = vmatprep.subr.bf16.mxu0 %v1446
    %2404 = vmatpush1.bf16.msra.mxu0 %v1445
    %2405 = vmatprep.subr.bf16.mxu0 %v1448
    %2406 = vmatpush1.bf16.msra.mxu0 %v1447
    %2407 = vmatprep.subr.bf16.mxu0 %v1450
    %2408 = vmatpush1.bf16.msra.mxu0 %v1449
    %2409 = vmatprep.subr.bf16.mxu0 %v1452
    %2410 = vmatpush1.bf16.msra.mxu0 %v1451
    %2411 = vmatprep.subr.bf16.mxu0 %v1454
    %2412 = vmatpush1.bf16.msra.mxu0 %v1453
    %2413 = vmatprep.subr.bf16.mxu0 %v1456
    %2414 = vmatpush1.bf16.msra.mxu0 %v1455
    %2415 = vmatprep.subr.bf16.mxu0 %v1458
    %2416 = vmatpush1.bf16.msra.mxu0 %v1457
    %2417 = vmatprep.subr.bf16.mxu0 %v1460
    %2418 = vmatpush1.bf16.msra.mxu0 %v1459
    %2419 = vmatprep.subr.bf16.mxu0 %v1462
    %2420 = vmatpush1.bf16.msra.mxu0 %v1461
    %2421 = vmatprep.subr.bf16.mxu0 %v1464
    %2422 = vmatpush1.bf16.msra.mxu0 %v1463
    %2423 = vmatprep.subr.bf16.mxu0 %v1466
    %2424 = vmatpush1.bf16.msra.mxu0 %v1465
    %2425 = vmatprep.subr.bf16.mxu0 %v1468
    %2426 = vmatpush1.bf16.msra.mxu0 %v1467
    %2427 = vmatprep.subr.bf16.mxu0 %v1470
    %2428 = vmatpush1.bf16.msra.mxu0 %v1469
    %2429 = vmatprep.subr.bf16.mxu0 %v1472
    %2430 = vmatpush1.bf16.msra.mxu0 %v1471
    %2431 = vmatprep.mubr.bf16.mxu0 %v136
    %2432 = vmatmul.mubr.bf16.gmra.mrb[0].mxu0 %v135
    %v2433 = vpop.f32.mrb[0].mxu0
    %v2434 = vadd.f32 %v2393, %v2433
    %v2435 = vpop.f32.mrb[0].mxu0
    %v2436 = vadd.f32 %v2395, %v2435
    %v2437 = vpop.f32.mrb[0].mxu0
    %v2438 = vpop.f32.mrb[0].mxu0
    %2439 = vdwg.mxu0
    %2440 = vmatprep.subr.bf16.mxu0 %v1474
    %2441 = vmatpush1.bf16.msra.mxu0 %v1473
    %2442 = vmatprep.subr.bf16.mxu0 %v1476
    %2443 = vmatpush1.bf16.msra.mxu0 %v1475
    %2444 = vmatprep.subr.bf16.mxu0 %v1478
    %2445 = vmatpush1.bf16.msra.mxu0 %v1477
    %2446 = vmatprep.subr.bf16.mxu0 %v1480
    %2447 = vmatpush1.bf16.msra.mxu0 %v1479
    %2448 = vmatprep.subr.bf16.mxu0 %v1482
    %2449 = vmatpush1.bf16.msra.mxu0 %v1481
    %2450 = vmatprep.subr.bf16.mxu0 %v1484
    %2451 = vmatpush1.bf16.msra.mxu0 %v1483
    %2452 = vmatprep.subr.bf16.mxu0 %v1486
    %2453 = vmatpush1.bf16.msra.mxu0 %v1485
    %2454 = vmatprep.subr.bf16.mxu0 %v1488
    %2455 = vmatpush1.bf16.msra.mxu0 %v1487
    %2456 = vmatprep.subr.bf16.mxu0 %v1490
    %2457 = vmatpush1.bf16.msra.mxu0 %v1489
    %2458 = vmatprep.subr.bf16.mxu0 %v1492
    %2459 = vmatpush1.bf16.msra.mxu0 %v1491
    %2460 = vmatprep.subr.bf16.mxu0 %v1494
    %2461 = vmatpush1.bf16.msra.mxu0 %v1493
    %2462 = vmatprep.subr.bf16.mxu0 %v1496
    %2463 = vmatpush1.bf16.msra.mxu0 %v1495
    %2464 = vmatprep.subr.bf16.mxu0 %v1498
    %2465 = vmatpush1.bf16.msra.mxu0 %v1497
    %2466 = vmatprep.subr.bf16.mxu0 %v1500
    %2467 = vmatpush1.bf16.msra.mxu0 %v1499
    %2468 = vmatprep.subr.bf16.mxu0 %v1502
    %2469 = vmatpush1.bf16.msra.mxu0 %v1501
    %2470 = vmatprep.subr.bf16.mxu0 %v1504
    %2471 = vmatpush1.bf16.msra.mxu0 %v1503
    %2472 = vmatprep.mubr.bf16.mxu0 %v138
    %2473 = vmatmul.mubr.bf16.gmra.mrb[0].mxu0 %v137
    %v2474 = vpop.f32.mrb[0].mxu0
    %v2475 = vadd.f32 %v2434, %v2474
    %v2476 = vpop.f32.mrb[0].mxu0
    %v2477 = vadd.f32 %v2436, %v2476
    %v2478 = vpop.f32.mrb[0].mxu0
    %v2479 = vpop.f32.mrb[0].mxu0
    %2480 = vdwg.mxu0
    %2481 = vmatprep.subr.bf16.mxu0 %v1506
    %2482 = vmatpush1.bf16.msra.mxu0 %v1505
    %2483 = vmatprep.subr.bf16.mxu0 %v1508
    %2484 = vmatpush1.bf16.msra.mxu0 %v1507
    %2485 = vmatprep.subr.bf16.mxu0 %v1510
    %2486 = vmatpush1.bf16.msra.mxu0 %v1509
    %2487 = vmatprep.subr.bf16.mxu0 %v1512
    %2488 = vmatpush1.bf16.msra.mxu0 %v1511
    %2489 = vmatprep.subr.bf16.mxu0 %v1514
    %2490 = vmatpush1.bf16.msra.mxu0 %v1513
    %2491 = vmatprep.subr.bf16.mxu0 %v1516
    %2492 = vmatpush1.bf16.msra.mxu0 %v1515
    %2493 = vmatprep.subr.bf16.mxu0 %v1518
    %2494 = vmatpush1.bf16.msra.mxu0 %v1517
    %2495 = vmatprep.subr.bf16.mxu0 %v1520
    %2496 = vmatpush1.bf16.msra.mxu0 %v1519
    %2497 = vmatprep.subr.bf16.mxu0 %v1522
    %2498 = vmatpush1.bf16.msra.mxu0 %v1521
    %2499 = vmatprep.subr.bf16.mxu0 %v1524
    %2500 = vmatpush1.bf16.msra.mxu0 %v1523
    %2501 = vmatprep.subr.bf16.mxu0 %v1526
    %2502 = vmatpush1.bf16.msra.mxu0 %v1525
    %2503 = vmatprep.subr.bf16.mxu0 %v1528
    %2504 = vmatpush1.bf16.msra.mxu0 %v1527
    %2505 = vmatprep.subr.bf16.mxu0 %v1530
    %2506 = vmatpush1.bf16.msra.mxu0 %v1529
    %2507 = vmatprep.subr.bf16.mxu0 %v1532
    %2508 = vmatpush1.bf16.msra.mxu0 %v1531
    %2509 = vmatprep.subr.bf16.mxu0 %v1534
    %2510 = vmatpush1.bf16.msra.mxu0 %v1533
    %2511 = vmatprep.subr.bf16.mxu0 %v1536
    %2512 = vmatpush1.bf16.msra.mxu0 %v1535
    %2513 = vmatprep.mubr.bf16.mxu0 %v140
    %2514 = vmatmul.mubr.bf16.gmra.mrb[0].mxu0 %v139
    %v2515 = vpop.f32.mrb[0].mxu0
    %v2516 = vadd.f32 %v2475, %v2515
    %v2517 = vpop.f32.mrb[0].mxu0
    %v2518 = vadd.f32 %v2477, %v2517
    %v2519 = vpop.f32.mrb[0].mxu0
    %v2520 = vpop.f32.mrb[0].mxu0
    %2521 = vdwg.mxu0
    %2522 = vmatprep.subr.bf16.mxu0 %v1538
    %2523 = vmatpush1.bf16.msra.mxu0 %v1537
    %2524 = vmatprep.subr.bf16.mxu0 %v1540
    %2525 = vmatpush1.bf16.msra.mxu0 %v1539
    %2526 = vmatprep.subr.bf16.mxu0 %v1542
    %2527 = vmatpush1.bf16.msra.mxu0 %v1541
    %2528 = vmatprep.subr.bf16.mxu0 %v1544
    %2529 = vmatpush1.bf16.msra.mxu0 %v1543
    %2530 = vmatprep.subr.bf16.mxu0 %v1546
    %2531 = vmatpush1.bf16.msra.mxu0 %v1545
    %2532 = vmatprep.subr.bf16.mxu0 %v1548
    %2533 = vmatpush1.bf16.msra.mxu0 %v1547
    %2534 = vmatprep.subr.bf16.mxu0 %v1550
    %2535 = vmatpush1.bf16.msra.mxu0 %v1549
    %2536 = vmatprep.subr.bf16.mxu0 %v1552
    %2537 = vmatpush1.bf16.msra.mxu0 %v1551
    %2538 = vmatprep.subr.bf16.mxu0 0
    %2539 = vmatpush1.bf16.msra.mxu0 0
    %2540 = vmatprep.subr.bf16.mxu0 0
    %2541 = vmatpush1.bf16.msra.mxu0 0
    %2542 = vmatprep.subr.bf16.mxu0 0
    %2543 = vmatpush1.bf16.msra.mxu0 0
    %2544 = vmatprep.subr.bf16.mxu0 0
    %2545 = vmatpush1.bf16.msra.mxu0 0
    %2546 = vmatprep.subr.bf16.mxu0 0
    %2547 = vmatpush1.bf16.msra.mxu0 0
    %2548 = vmatprep.subr.bf16.mxu0 0
    %2549 = vmatpush1.bf16.msra.mxu0 0
    %2550 = vmatprep.subr.bf16.mxu0 0
    %2551 = vmatpush1.bf16.msra.mxu0 0
    %2552 = vmatprep.subr.bf16.mxu0 0
    %2553 = vmatpush1.bf16.msra.mxu0 0
    %2554 = vmatprep.mubr.bf16.mxu0 0
    %2555 = vmatmul.mubr.bf16.gmra.mrb[0].mxu0 %v141
    %v2556 = vpop.f32.mrb[0].mxu0
    %v2557 = vadd.f32 %v2516, %v2556
    %v2558 = vpop.f32.mrb[0].mxu0
    %v2559 = vadd.f32 %v2518, %v2558
    %v2560 = vpop.f32.mrb[0].mxu0
    %v2561 = vpop.f32.mrb[0].mxu0
    %2562 = vdwg.mxu0
    %v2563 = vmax.f32 %v2559, 1e-30
    %v2564 = vrcp.pop %v2563
    %v2565 = vmul.f32 %v2557, %v2564
    %2566 = vst [vmem:[#allocation7] sm:$0xff] %v2565
    // Predicated region
    $region18: #{tpu_custom_call.1} parent=1 // pred_check
      _
    $region19: #{tpu_custom_call.1} parent=1 // pred_check_branch
      %2568 = sbr.rel (0) target = $region21
    $region20: #{tpu_custom_call.1} parent=1 // pred_region
      %s2570 = ssub.s32 128, 128
      %2571 = vsyncadd [#allocation4], %s2570
      %s2573 = sshll.u32 [#allocation7], 4
      %s2574 = int_to_ptr.vmem [resolvable:$true] %s2573
      %2576 = dma.vmem_to_hbm [thread:$0]  %s2574, 128, %s2, [#allocation4]
    $region21: #{tpu_custom_call.1} parent=1 // pred_fallthru
      _
    // Predicated region
    $region22: #{tpu_custom_call.1} parent=1 // pred_check
      _
    $region23: #{tpu_custom_call.1} parent=1 // pred_check_branch
      %2578 = sbr.rel (0) target = $region25
    $region24: #{tpu_custom_call.1} parent=1 // pred_region
      %2579 = dma.done [#allocation4], 128
    $region25: #{tpu_custom_call.1} parent=1 // pred_fallthru
      _
    %2580 = vsyncpa [#allocation3], 1
    %2581 = vsyncpa [#allocation6], 1
    %2582 = vsyncpa [#allocation4], 1

</llo_original>
